<compile_context>
chip_gen: v6e
topology: v6e:2x2x1
jax: 0.10.0
libtpu: 0.0.40
codegen_flags: <defaults>
</compile_context>

<pallas_src>
import functools

import jax
import jax.numpy as jnp
import numpy as np
from jax import lax
from jax.experimental import pallas as pl
from jax.experimental.pallas import tpu as pltpu


def _rotation_hopfield_kernel(x_ref, featc_ref, featr_ref, mask_ref, out_ref, *,
                              beta, lr, tol, max_iter, check_every, use_mxu):
    tb = x_ref.shape[1]            # batch lanes in this block
    n_pat = featc_ref.shape[0]

    # State carried as lane-dense (1, TB) rows: batch on lanes, so every VPU /
    # EUP op in the hot loop works on fully packed vregs.
    a0 = x_ref[0:1, :]
    b0 = x_ref[1:2, :]

    # lr folded with the mask into per-coordinate step sizes (hoisted):
    # masked lanes take zero-length steps (da = 0 < tol, never blocks the test).
    lr_a = jnp.where(mask_ref[0:1, :] > 0.5, jnp.float32(lr), jnp.float32(0.0))
    lr_b = jnp.where(mask_ref[1:2, :] > 0.5, jnp.float32(lr), jnp.float32(0.0))

    inv_beta = jnp.float32(1.0 / beta)

    if use_mxu:
        # Large pattern count: logits and the four reductions go to the
        # (otherwise idle) MXU.
        featc = featc_ref[...]            # (N, 4)  cols [b*f1, b*f2, b*f3, 1]
        featr = featr_ref[...]            # (8, N)  rows [b*f1, b*f2, b*f3, 1, 0..]
        f1p = f2p = f3p = None
    else:
        # Small N: broadcast/XLU path.  Hoist the loop-invariant (N,1)->(N,TB)
        # broadcasts of the beta-scaled pattern features (JAX does not CSE
        # broadcast_in_dim -- doing this in the loop re-materialises it).
        f1p = jnp.broadcast_to(featc_ref[:, 0:1], (n_pat, tb))
        f2p = jnp.broadcast_to(featc_ref[:, 1:2], (n_pat, tb))
        f3p = jnp.broadcast_to(featc_ref[:, 2:3], (n_pat, tb))

    def cond(carry):
        i, _, _, _, _, done = carry
        # Only scalar sync point: once per check_every-step block.
        return jnp.logical_and(i < max_iter, done[0, 0] < 0.5)

    def body(carry):
        i, a, b, snap_a, snap_b, done = carry

        def one_step(j, c):
            a, b, snap_a, snap_b, done = c
            a2 = a * a
            b2 = b * b
            ab = a * b
            # phi(x): rotation-invariant features of the state, (1, TB) rows.
            f1x = a2 + b2
            f2x = a2 * b2
            f3x = ab * (a2 - b2)

            if use_mxu:
                phix = jnp.concatenate(
                    [f1x, f2x, f3x, jnp.zeros_like(f1x)], axis=0)     # (4, TB)
                z = jnp.dot(featc, phix,
                            preferred_element_type=jnp.float32)        # (N, TB)
            else:
                z = f1x * f1p + f2x * f2p + f3x * f3p                   # (N, TB)

            m = jnp.max(z, axis=0, keepdims=True)                       # (1, TB)
            e = jnp.exp(z - m)                                          # (N, TB)

            if use_mxu:
                red = jnp.dot(featr, e,
                              preferred_element_type=jnp.float32)       # (8, TB)
                w1 = red[0:1, :]
                w2 = red[1:2, :]
                w3 = red[2:3, :]
                sum_e = red[3:4, :]
            else:
                sum_e = jnp.sum(e, axis=0, keepdims=True)
                w1 = jnp.sum(e * f1p, axis=0, keepdims=True)
                w2 = jnp.sum(e * f2p, axis=0, keepdims=True)
                w3 = jnp.sum(e * f3p, axis=0, keepdims=True)

            # 1/(beta*sum_e): EUP approx reciprocal + one Newton step (restores
            # ~full f32 accuracy, keeps the divide chain off the VPU path).
            inv0 = pl.reciprocal(sum_e, approx=True)
            inv = inv0 * (2.0 - sum_e * inv0) * inv_beta

            # dE/dphi(x) = phi(x) - softmax(beta * logits) @ phi(patterns)
            g1 = f1x - w1 * inv
            g2 = f2x - w2 * inv
            g3 = f3x - w3 * inv

            # chain rule through phi (Jacobian^T @ g); masked lr folded in.
            grad_a = 2.0 * a * g1 + 2.0 * a * b2 * g2 + b * (3.0 * a2 - b2) * g3
            grad_b = 2.0 * b * g1 + 2.0 * a2 * b * g2 + a * (a2 - 3.0 * b2) * g3
            da = lr_a * grad_a
            db = lr_b * grad_b

            # Convergence bookkeeping stays on the vector path (no per-step
            # vreg->sreg sync): snapshot the PRE-update state at the first
            # converged step so torch's break-before-update point is exact.
            conv = (jnp.max(jnp.maximum(jnp.abs(da), jnp.abs(db)),
                            axis=1, keepdims=True) < tol).astype(jnp.float32)
            keep = jnp.broadcast_to(done, a.shape) > 0.5
            snap_a = jnp.where(keep, snap_a, a)
            snap_b = jnp.where(keep, snap_b, b)
            done = jnp.maximum(done, conv)

            # Main gradient chain advances unconditionally (scalar max_iter
            # gate only -- known at block entry, never waits on vector work).
            gate = ((i + j) < max_iter).astype(jnp.float32)
            a = a - gate * da
            b = b - gate * db
            return (a, b, snap_a, snap_b, done)

        a, b, snap_a, snap_b, done = lax.fori_loop(
            0, check_every, one_step, (a, b, snap_a, snap_b, done), unroll=True)
        return (i + check_every, a, b, snap_a, snap_b, done)

    done0 = jnp.zeros((1, 1), jnp.float32)
    init = (jnp.int32(0), a0, b0, a0, b0, done0)
    _, a, b, snap_a, snap_b, done = lax.while_loop(cond, body, init)

    # On convergence return the snapshot (pre-update x at the break step),
    # exactly like torch's `break` before `x = x_new`.
    conv_v = jnp.broadcast_to(done, a.shape) > 0.5
    out_ref[0:1, :] = jnp.where(conv_v, snap_a, a)
    out_ref[1:2, :] = jnp.where(conv_v, snap_b, b)


def rotation_hopfield_2d(x, patterns, mask=None, *, max_iter=1000, tol=1e-6,
                         beta=0.01, lr=0.01, block_b=None, check_every=8):
    """Pallas equivalent of RotationHopfieldNetwork2D(patterns).forward(x).

    block_b: optional batch-block size (rounded up to a multiple of 128).
      Default keeps the whole batch in one block, which matches the torch
      reference exactly (convergence is tested over the full batch).  On a
      v7x (2 TensorCores) pass a block size to shard the batch across cores;
      each block then early-exits on its own convergence test, which can
      differ from whole-batch semantics by a few gradient steps.
    check_every: convergence is checked on the scalar path once every
      `check_every` gradient steps (amortized sync); the returned state is
      still the exact pre-update state at the break iteration.
    """
    x = jnp.asarray(x, jnp.float32)
    patterns = jnp.asarray(patterns, jnp.float32)
    assert x.ndim == 2 and x.shape[1] == 2, "x must be (b, 2)"
    assert patterns.ndim == 2 and patterns.shape[1] == 2, "patterns must be (n, 2)"
    B = x.shape[0]
    N = patterns.shape[0]

    if mask is None:
        mask = jnp.ones_like(x)
    mask = jnp.asarray(mask).astype(jnp.float32)

    # Batch on the LANE dimension: all state tensors in the kernel are (1, B)
    # lane-dense rows and the (N, B) softmax block is fully packed.
    xT = x.T
    maskT = mask.T

    # Block size: whole batch by default; cap so the ~6 live (N, TB) f32
    # per-iteration temporaries stay ~2 MiB (safe for v7x's smaller VMEM).
    # Note: if the cap forces tiling, convergence becomes per-block.
    lane = 128
    cap = max(lane, ((2 * 1024 * 1024) // (24 * max(N, 1))) // lane * lane)
    if block_b is None:
        tb = B if B <= cap else cap
    else:
        tb = max(lane, -(-int(block_b) // lane) * lane)
    if tb >= B:
        tb, n_blk, Bp = B, 1, B
    else:
        n_blk = -(-B // tb)
        Bp = n_blk * tb
    if Bp != B:
        pad = Bp - B
        # inert padding: x = 0 (finite, zero gradient), mask = 0 (da = 0 < tol)
        xT = jnp.pad(xT, ((0, 0), (0, pad)))
        maskT = jnp.pad(maskT, ((0, 0), (0, pad)))

    # beta-scaled rotation-invariant features of the stored patterns,
    # precomputed once (loop- and grid-invariant).
    pa, pb = patterns[:, 0], patterns[:, 1]
    f1 = pa * pa + pb * pb
    f2 = (pa * pa) * (pb * pb)
    f3 = pa ** 3 * pb - pa * pb ** 3
    feats = jnp.float32(beta) * jnp.stack([f1, f2, f3], axis=0)          # (3, N)
    featp_c = jnp.concatenate(
        [feats.T, jnp.ones((N, 1), jnp.float32)], axis=1)                # (N, 4)
    featp_r = jnp.concatenate(
        [feats, jnp.ones((1, N), jnp.float32), jnp.zeros((4, N), jnp.float32)],
        axis=0)                                                          # (8, N)

    use_mxu = N >= 128   # MXU reductions only pay off for large pattern counts
    check_every = max(1, min(int(check_every), int(max_iter)))

    kernel = functools.partial(
        _rotation_hopfield_kernel, beta=float(beta), lr=float(lr),
        tol=float(tol), max_iter=int(max_iter), check_every=check_every,
        use_mxu=use_mxu)

    # Advisory cost hint: the body is traced once but loops up to max_iter
    # times at runtime; tell XLA this is not a cheap op.
    cost = pl.CostEstimate(
        flops=int(max_iter) * Bp * (15 * N + 60),
        transcendentals=int(max_iter) * Bp * (N + 2),
        bytes_accessed=4 * (3 * 2 * Bp + 12 * N),
    )

    out = pl.pallas_call(
        kernel,
        grid=(n_blk,),
        out_shape=jax.ShapeDtypeStruct((2, Bp), jnp.float32),
        in_specs=[
            pl.BlockSpec((2, tb), lambda i: (0, i)),    # x^T
            pl.BlockSpec((N, 4), lambda i: (0, 0)),     # pattern feats (columns)
            pl.BlockSpec((8, N), lambda i: (0, 0)),     # pattern feats (rows)
            pl.BlockSpec((2, tb), lambda i: (0, i)),    # mask^T
        ],
        out_specs=pl.BlockSpec((2, tb), lambda i: (0, i)),
        compiler_params=pltpu.CompilerParams(
            dimension_semantics=("parallel",)),
        cost_estimate=cost,
    )(xT, featp_c, featp_r, maskT)
    return out[:, :B].T


# ---------------- pure-JAX reference (uses autodiff, mirrors torch code) -----

def _phi(v):
    a, b = v[:, 0], v[:, 1]
    return jnp.stack([a * a + b * b, a * a * b * b, a ** 3 * b - a * b ** 3],
                     axis=1)


def _energy_sum(x, patterns, beta):
    phi_x = _phi(x)
    phi_p = _phi(patterns)
    logits = phi_x @ phi_p.T
    m = jnp.max(beta * logits, axis=1, keepdims=True)
    lse = (m[:, 0] + jnp.log(jnp.sum(jnp.exp(beta * logits - m), axis=1))) / beta
    l2 = 0.5 * jnp.sum(phi_x ** 2, axis=1)
    return jnp.sum(-lse + l2)


@functools.partial(jax.jit, static_argnames=("max_iter",))
def _reference(x, patterns, mask, max_iter=1000, tol=1e-6, beta=0.01, lr=0.01):
    grad_fn = jax.grad(_energy_sum)

    def body(_, carry):
        xc, done = carry
        g = grad_fn(xc, patterns, beta)
        x_new = jnp.where(mask, xc - lr * g, xc)
        conv = jnp.all(jnp.abs(x_new - xc) < tol)
        new_done = jnp.logical_or(done, conv)
        return jnp.where(new_done, xc, x_new), new_done

    xf, _ = lax.fori_loop(0, max_iter, body, (x, jnp.bool_(False)))
    return xf


if __name__ == "__main__":
    key = jax.random.PRNGKey(0)
    k_pat, k_x, k_mask = jax.random.split(key, 3)

    B, N = 8, 4
    patterns = jax.random.normal(k_pat, (N, 2), jnp.float32)      # stored patterns
    x = 0.5 * jax.random.normal(k_x, (B, 2), jnp.float32)         # query states
    mask = jax.random.uniform(k_mask, (B, 2)) > 0.25              # some coords frozen

    out = rotation_hopfield_2d(x, patterns, mask=mask, max_iter=1000)
    out = jax.block_until_ready(out)

    ref = jax.block_until_ready(_reference(x, patterns, mask, max_iter=1000))
    if not np.allclose(np.asarray(out), np.asarray(ref), atol=2e-3, rtol=2e-3):
        raise AssertionError(
            f"Pallas kernel mismatch vs reference:\n{out}\nvs\n{ref}")

    print("KERNEL_OK")
</pallas_src>

<mosaic_0001>
module attributes {stable_mosaic.version = 11 : i64} {
  func.func @_rotation_hopfield_kernel(%arg0: i32, %arg1: memref<2x8xf32, #tpu.memory_space<vmem>>, %arg2: memref<4x4xf32, #tpu.memory_space<vmem>>, %arg3: memref<8x4xf32, #tpu.memory_space<vmem>>, %arg4: memref<2x8xf32, #tpu.memory_space<vmem>>, %arg5: memref<2x8xf32, #tpu.memory_space<vmem>>) attributes {dimension_semantics = [#tpu.dimension_semantics<parallel>], iteration_bounds = array<i64: 1>, scalar_prefetch = 0 : i64, scratch_operands = 0 : i64, tpu.core_type = #tpu.core_type<tc>, window_params = [{transform_indices = @transform_0, window_bounds = array<i64: 2, 8>}, {pipeline_mode = #tpu.pipeline_mode<synchronous>, transform_indices = @transform_1, window_bounds = array<i64: 4, 4>}, {pipeline_mode = #tpu.pipeline_mode<synchronous>, transform_indices = @transform_2, window_bounds = array<i64: 8, 4>}, {transform_indices = @transform_3, window_bounds = array<i64: 2, 8>}, {transform_indices = @transform_4, window_bounds = array<i64: 2, 8>}]} {
    %c0 = arith.constant 0 : index
    %c0_0 = arith.constant 0 : index
    %0 = vector.load %arg1[%c0, %c0_0] : memref<2x8xf32, #tpu.memory_space<vmem>>, vector<1x8xf32>
    %c1 = arith.constant 1 : index
    %c0_1 = arith.constant 0 : index
    %1 = vector.load %arg1[%c1, %c0_1] : memref<2x8xf32, #tpu.memory_space<vmem>>, vector<1x8xf32>
    %c0_2 = arith.constant 0 : index
    %c0_3 = arith.constant 0 : index
    %2 = vector.load %arg4[%c0_2, %c0_3] : memref<2x8xf32, #tpu.memory_space<vmem>>, vector<1x8xf32>
    %cst = arith.constant 5.000000e-01 : f32
    %3 = vector.broadcast %cst : f32 to vector<1x8xf32>
    %4 = arith.cmpf ogt, %2, %3 : vector<1x8xf32>
    %cst_4 = arith.constant 0.00999999977 : f32
    %cst_5 = arith.constant 0.000000e+00 : f32
    %5 = vector.broadcast %cst_4 : f32 to vector<1x8xf32>
    %6 = vector.broadcast %cst_5 : f32 to vector<1x8xf32>
    %7 = arith.select %4, %5, %6 : vector<1x8xi1>, vector<1x8xf32>
    %c1_6 = arith.constant 1 : index
    %c0_7 = arith.constant 0 : index
    %8 = vector.load %arg4[%c1_6, %c0_7] : memref<2x8xf32, #tpu.memory_space<vmem>>, vector<1x8xf32>
    %cst_8 = arith.constant 5.000000e-01 : f32
    %9 = vector.broadcast %cst_8 : f32 to vector<1x8xf32>
    %10 = arith.cmpf ogt, %8, %9 : vector<1x8xf32>
    %cst_9 = arith.constant 0.00999999977 : f32
    %cst_10 = arith.constant 0.000000e+00 : f32
    %11 = vector.broadcast %cst_9 : f32 to vector<1x8xf32>
    %12 = vector.broadcast %cst_10 : f32 to vector<1x8xf32>
    %13 = arith.select %10, %11, %12 : vector<1x8xi1>, vector<1x8xf32>
    %c0_11 = arith.constant 0 : index
    %c0_12 = arith.constant 0 : index
    %14 = vector.load %arg2[%c0_11, %c0_12] : memref<4x4xf32, #tpu.memory_space<vmem>>, vector<4x1xf32>
    %15 = vector.shape_cast %14 : vector<4x1xf32> to vector<4x1xf32>
    %16 = vector.broadcast %15 : vector<4x1xf32> to vector<4x8xf32>
    %c0_13 = arith.constant 0 : index
    %c1_14 = arith.constant 1 : index
    %17 = vector.load %arg2[%c0_13, %c1_14] : memref<4x4xf32, #tpu.memory_space<vmem>>, vector<4x1xf32>
    %18 = vector.shape_cast %17 : vector<4x1xf32> to vector<4x1xf32>
    %19 = vector.broadcast %18 : vector<4x1xf32> to vector<4x8xf32>
    %c0_15 = arith.constant 0 : index
    %c2 = arith.constant 2 : index
    %20 = vector.load %arg2[%c0_15, %c2] : memref<4x4xf32, #tpu.memory_space<vmem>>, vector<4x1xf32>
    %21 = vector.shape_cast %20 : vector<4x1xf32> to vector<4x1xf32>
    %22 = vector.broadcast %21 : vector<4x1xf32> to vector<4x8xf32>
    %cst_16 = arith.constant 0.000000e+00 : f32
    %23 = vector.broadcast %cst_16 : f32 to vector<1x1xf32>
    %cst_17 = arith.constant 1.000000e+02 : f32
    %c0_i32 = arith.constant 0 : i32
    %24:6 = scf.while (%arg6 = %c0_i32, %arg7 = %0, %arg8 = %1, %arg9 = %0, %arg10 = %1, %arg11 = %23) : (i32, vector<1x8xf32>, vector<1x8xf32>, vector<1x8xf32>, vector<1x8xf32>, vector<1x1xf32>) -> (i32, vector<1x8xf32>, vector<1x8xf32>, vector<1x8xf32>, vector<1x8xf32>, vector<1x1xf32>) {
      %c1000_i32 = arith.constant 1000 : i32
      %33 = arith.cmpi slt, %arg6, %c1000_i32 : i32
      %34 = vector.extract %arg11[0, 0] : f32 from vector<1x1xf32>
      %cst_23 = arith.constant 5.000000e-01 : f32
      %35 = arith.cmpf olt, %34, %cst_23 : f32
      %36 = arith.andi %33, %35 : i1
      scf.condition(%36) %arg6, %arg7, %arg8, %arg9, %arg10, %arg11 : i32, vector<1x8xf32>, vector<1x8xf32>, vector<1x8xf32>, vector<1x8xf32>, vector<1x1xf32>
    } do {
    ^bb0(%arg6: i32, %arg7: vector<1x8xf32>, %arg8: vector<1x8xf32>, %arg9: vector<1x8xf32>, %arg10: vector<1x8xf32>, %arg11: vector<1x1xf32>):
      %c0_i32_23 = arith.constant 0 : i32
      %33 = arith.mulf %arg7, %arg7 : vector<1x8xf32>
      %34 = arith.mulf %arg8, %arg8 : vector<1x8xf32>
      %35 = arith.mulf %arg7, %arg8 : vector<1x8xf32>
      %36 = arith.addf %33, %34 : vector<1x8xf32>
      %37 = arith.mulf %33, %34 : vector<1x8xf32>
      %38 = arith.subf %33, %34 : vector<1x8xf32>
      %39 = arith.mulf %35, %38 : vector<1x8xf32>
      %40 = vector.broadcast %36 : vector<1x8xf32> to vector<4x8xf32>
      %41 = arith.mulf %40, %16 : vector<4x8xf32>
      %42 = vector.broadcast %37 : vector<1x8xf32> to vector<4x8xf32>
      %43 = arith.mulf %42, %19 : vector<4x8xf32>
      %44 = arith.addf %41, %43 : vector<4x8xf32>
      %45 = vector.broadcast %39 : vector<1x8xf32> to vector<4x8xf32>
      %46 = arith.mulf %45, %22 : vector<4x8xf32>
      %47 = arith.addf %44, %46 : vector<4x8xf32>
      %cst_24 = arith.constant dense<0xFF800000> : vector<8xf32>
      %48 = vector.multi_reduction <maximumf>, %47, %cst_24 [0] : vector<4x8xf32> to vector<8xf32>
      %49 = vector.shape_cast %48 : vector<8xf32> to vector<1x8xf32>
      %50 = vector.broadcast %49 : vector<1x8xf32> to vector<4x8xf32>
      %51 = arith.subf %47, %50 : vector<4x8xf32>
      %52 = math.exp %51 : vector<4x8xf32>
      %cst_25 = arith.constant dense<0.000000e+00> : vector<8xf32>
      %53 = vector.multi_reduction <add>, %52, %cst_25 [0] : vector<4x8xf32> to vector<8xf32>
      %54 = vector.shape_cast %53 : vector<8xf32> to vector<1x8xf32>
      %55 = arith.mulf %52, %16 : vector<4x8xf32>
      %cst_26 = arith.constant dense<0.000000e+00> : vector<8xf32>
      %56 = vector.multi_reduction <add>, %55, %cst_26 [0] : vector<4x8xf32> to vector<8xf32>
      %57 = vector.shape_cast %56 : vector<8xf32> to vector<1x8xf32>
      %58 = arith.mulf %52, %19 : vector<4x8xf32>
      %cst_27 = arith.constant dense<0.000000e+00> : vector<8xf32>
      %59 = vector.multi_reduction <add>, %58, %cst_27 [0] : vector<4x8xf32> to vector<8xf32>
      %60 = vector.shape_cast %59 : vector<8xf32> to vector<1x8xf32>
      %61 = arith.mulf %52, %22 : vector<4x8xf32>
      %cst_28 = arith.constant dense<0.000000e+00> : vector<8xf32>
      %62 = vector.multi_reduction <add>, %61, %cst_28 [0] : vector<4x8xf32> to vector<8xf32>
      %63 = vector.shape_cast %62 : vector<8xf32> to vector<1x8xf32>
      %64 = tpu.reciprocal %54 {approx = true} : vector<1x8xf32> -> vector<1x8xf32>
      %65 = arith.mulf %54, %64 : vector<1x8xf32>
      %cst_29 = arith.constant 2.000000e+00 : f32
      %66 = vector.broadcast %cst_29 : f32 to vector<1x8xf32>
      %67 = arith.subf %66, %65 : vector<1x8xf32>
      %68 = arith.mulf %64, %67 : vector<1x8xf32>
      %69 = vector.broadcast %cst_17 : f32 to vector<1x8xf32>
      %70 = arith.mulf %68, %69 : vector<1x8xf32>
      %71 = arith.mulf %57, %70 : vector<1x8xf32>
      %72 = arith.subf %36, %71 : vector<1x8xf32>
      %73 = arith.mulf %60, %70 : vector<1x8xf32>
      %74 = arith.subf %37, %73 : vector<1x8xf32>
      %75 = arith.mulf %63, %70 : vector<1x8xf32>
      %76 = arith.subf %39, %75 : vector<1x8xf32>
      %cst_30 = arith.constant 2.000000e+00 : f32
      %77 = vector.broadcast %cst_30 : f32 to vector<1x8xf32>
      %78 = arith.mulf %77, %arg7 : vector<1x8xf32>
      %79 = arith.mulf %78, %72 : vector<1x8xf32>
      %cst_31 = arith.constant 2.000000e+00 : f32
      %80 = vector.broadcast %cst_31 : f32 to vector<1x8xf32>
      %81 = arith.mulf %80, %arg7 : vector<1x8xf32>
      %82 = arith.mulf %81, %34 : vector<1x8xf32>
      %83 = arith.mulf %82, %74 : vector<1x8xf32>
      %84 = arith.addf %79, %83 : vector<1x8xf32>
      %cst_32 = arith.constant 3.000000e+00 : f32
      %85 = vector.broadcast %cst_32 : f32 to vector<1x8xf32>
      %86 = arith.mulf %85, %33 : vector<1x8xf32>
      %87 = arith.subf %86, %34 : vector<1x8xf32>
      %88 = arith.mulf %arg8, %87 : vector<1x8xf32>
      %89 = arith.mulf %88, %76 : vector<1x8xf32>
      %90 = arith.addf %84, %89 : vector<1x8xf32>
      %cst_33 = arith.constant 2.000000e+00 : f32
      %91 = vector.broadcast %cst_33 : f32 to vector<1x8xf32>
      %92 = arith.mulf %91, %arg8 : vector<1x8xf32>
      %93 = arith.mulf %92, %72 : vector<1x8xf32>
      %cst_34 = arith.constant 2.000000e+00 : f32
      %94 = vector.broadcast %cst_34 : f32 to vector<1x8xf32>
      %95 = arith.mulf %94, %33 : vector<1x8xf32>
      %96 = arith.mulf %95, %arg8 : vector<1x8xf32>
      %97 = arith.mulf %96, %74 : vector<1x8xf32>
      %98 = arith.addf %93, %97 : vector<1x8xf32>
      %cst_35 = arith.constant 3.000000e+00 : f32
      %99 = vector.broadcast %cst_35 : f32 to vector<1x8xf32>
      %100 = arith.mulf %99, %34 : vector<1x8xf32>
      %101 = arith.subf %33, %100 : vector<1x8xf32>
      %102 = arith.mulf %arg7, %101 : vector<1x8xf32>
      %103 = arith.mulf %102, %76 : vector<1x8xf32>
      %104 = arith.addf %98, %103 : vector<1x8xf32>
      %105 = arith.mulf %7, %90 : vector<1x8xf32>
      %106 = arith.mulf %13, %104 : vector<1x8xf32>
      %107 = math.absf %105 : vector<1x8xf32>
      %108 = math.absf %106 : vector<1x8xf32>
      %109 = arith.maximumf %107, %108 : vector<1x8xf32>
      %cst_36 = arith.constant dense<0xFF800000> : vector<1xf32>
      %110 = vector.multi_reduction <maximumf>, %109, %cst_36 [1] : vector<1x8xf32> to vector<1xf32>
      %111 = vector.shape_cast %110 : vector<1xf32> to vector<1x1xf32>
      %cst_37 = arith.constant 9.99999997E-7 : f32
      %112 = vector.broadcast %cst_37 : f32 to vector<1x1xf32>
      %113 = arith.cmpf olt, %111, %112 : vector<1x1xf32>
      %114 = arith.extui %113 : vector<1x1xi1> to vector<1x1xi32>
      %115 = arith.sitofp %114 : vector<1x1xi32> to vector<1x1xf32>
      %116 = vector.shape_cast %arg11 : vector<1x1xf32> to vector<1x1xf32>
      %117 = vector.broadcast %116 : vector<1x1xf32> to vector<1x8xf32>
      %cst_38 = arith.constant 5.000000e-01 : f32
      %118 = vector.broadcast %cst_38 : f32 to vector<1x8xf32>
      %119 = arith.cmpf ogt, %117, %118 : vector<1x8xf32>
      %120 = arith.select %119, %arg9, %arg7 : vector<1x8xi1>, vector<1x8xf32>
      %121 = arith.select %119, %arg10, %arg8 : vector<1x8xi1>, vector<1x8xf32>
      %122 = arith.maximumf %arg11, %115 : vector<1x1xf32>
      %123 = arith.addi %arg6, %c0_i32_23 : i32
      %c1000_i32 = arith.constant 1000 : i32
      %124 = arith.cmpi slt, %123, %c1000_i32 : i32
      %125 = arith.extui %124 : i1 to i32
      %126 = arith.sitofp %125 : i32 to f32
      %127 = vector.broadcast %126 : f32 to vector<1x8xf32>
      %128 = arith.mulf %127, %105 : vector<1x8xf32>
      %129 = arith.subf %arg7, %128 : vector<1x8xf32>
      %130 = vector.broadcast %126 : f32 to vector<1x8xf32>
      %131 = arith.mulf %130, %106 : vector<1x8xf32>
      %132 = arith.subf %arg8, %131 : vector<1x8xf32>
      %c1_i32 = arith.constant 1 : i32
      %133 = arith.mulf %129, %129 : vector<1x8xf32>
      %134 = arith.mulf %132, %132 : vector<1x8xf32>
      %135 = arith.mulf %129, %132 : vector<1x8xf32>
      %136 = arith.addf %133, %134 : vector<1x8xf32>
      %137 = arith.mulf %133, %134 : vector<1x8xf32>
      %138 = arith.subf %133, %134 : vector<1x8xf32>
      %139 = arith.mulf %135, %138 : vector<1x8xf32>
      %140 = vector.broadcast %136 : vector<1x8xf32> to vector<4x8xf32>
      %141 = arith.mulf %140, %16 : vector<4x8xf32>
      %142 = vector.broadcast %137 : vector<1x8xf32> to vector<4x8xf32>
      %143 = arith.mulf %142, %19 : vector<4x8xf32>
      %144 = arith.addf %141, %143 : vector<4x8xf32>
      %145 = vector.broadcast %139 : vector<1x8xf32> to vector<4x8xf32>
      %146 = arith.mulf %145, %22 : vector<4x8xf32>
      %147 = arith.addf %144, %146 : vector<4x8xf32>
      %cst_39 = arith.constant dense<0xFF800000> : vector<8xf32>
      %148 = vector.multi_reduction <maximumf>, %147, %cst_39 [0] : vector<4x8xf32> to vector<8xf32>
      %149 = vector.shape_cast %148 : vector<8xf32> to vector<1x8xf32>
      %150 = vector.broadcast %149 : vector<1x8xf32> to vector<4x8xf32>
      %151 = arith.subf %147, %150 : vector<4x8xf32>
      %152 = math.exp %151 : vector<4x8xf32>
      %cst_40 = arith.constant dense<0.000000e+00> : vector<8xf32>
      %153 = vector.multi_reduction <add>, %152, %cst_40 [0] : vector<4x8xf32> to vector<8xf32>
      %154 = vector.shape_cast %153 : vector<8xf32> to vector<1x8xf32>
      %155 = arith.mulf %152, %16 : vector<4x8xf32>
      %cst_41 = arith.constant dense<0.000000e+00> : vector<8xf32>
      %156 = vector.multi_reduction <add>, %155, %cst_41 [0] : vector<4x8xf32> to vector<8xf32>
      %157 = vector.shape_cast %156 : vector<8xf32> to vector<1x8xf32>
      %158 = arith.mulf %152, %19 : vector<4x8xf32>
      %cst_42 = arith.constant dense<0.000000e+00> : vector<8xf32>
      %159 = vector.multi_reduction <add>, %158, %cst_42 [0] : vector<4x8xf32> to vector<8xf32>
      %160 = vector.shape_cast %159 : vector<8xf32> to vector<1x8xf32>
      %161 = arith.mulf %152, %22 : vector<4x8xf32>
      %cst_43 = arith.constant dense<0.000000e+00> : vector<8xf32>
      %162 = vector.multi_reduction <add>, %161, %cst_43 [0] : vector<4x8xf32> to vector<8xf32>
      %163 = vector.shape_cast %162 : vector<8xf32> to vector<1x8xf32>
      %164 = tpu.reciprocal %154 {approx = true} : vector<1x8xf32> -> vector<1x8xf32>
      %165 = arith.mulf %154, %164 : vector<1x8xf32>
      %cst_44 = arith.constant 2.000000e+00 : f32
      %166 = vector.broadcast %cst_44 : f32 to vector<1x8xf32>
      %167 = arith.subf %166, %165 : vector<1x8xf32>
      %168 = arith.mulf %164, %167 : vector<1x8xf32>
      %169 = vector.broadcast %cst_17 : f32 to vector<1x8xf32>
      %170 = arith.mulf %168, %169 : vector<1x8xf32>
      %171 = arith.mulf %157, %170 : vector<1x8xf32>
      %172 = arith.subf %136, %171 : vector<1x8xf32>
      %173 = arith.mulf %160, %170 : vector<1x8xf32>
      %174 = arith.subf %137, %173 : vector<1x8xf32>
      %175 = arith.mulf %163, %170 : vector<1x8xf32>
      %176 = arith.subf %139, %175 : vector<1x8xf32>
      %cst_45 = arith.constant 2.000000e+00 : f32
      %177 = vector.broadcast %cst_45 : f32 to vector<1x8xf32>
      %178 = arith.mulf %177, %129 : vector<1x8xf32>
      %179 = arith.mulf %178, %172 : vector<1x8xf32>
      %cst_46 = arith.constant 2.000000e+00 : f32
      %180 = vector.broadcast %cst_46 : f32 to vector<1x8xf32>
      %181 = arith.mulf %180, %129 : vector<1x8xf32>
      %182 = arith.mulf %181, %134 : vector<1x8xf32>
      %183 = arith.mulf %182, %174 : vector<1x8xf32>
      %184 = arith.addf %179, %183 : vector<1x8xf32>
      %cst_47 = arith.constant 3.000000e+00 : f32
      %185 = vector.broadcast %cst_47 : f32 to vector<1x8xf32>
      %186 = arith.mulf %185, %133 : vector<1x8xf32>
      %187 = arith.subf %186, %134 : vector<1x8xf32>
      %188 = arith.mulf %132, %187 : vector<1x8xf32>
      %189 = arith.mulf %188, %176 : vector<1x8xf32>
      %190 = arith.addf %184, %189 : vector<1x8xf32>
      %cst_48 = arith.constant 2.000000e+00 : f32
      %191 = vector.broadcast %cst_48 : f32 to vector<1x8xf32>
      %192 = arith.mulf %191, %132 : vector<1x8xf32>
      %193 = arith.mulf %192, %172 : vector<1x8xf32>
      %cst_49 = arith.constant 2.000000e+00 : f32
      %194 = vector.broadcast %cst_49 : f32 to vector<1x8xf32>
      %195 = arith.mulf %194, %133 : vector<1x8xf32>
      %196 = arith.mulf %195, %132 : vector<1x8xf32>
      %197 = arith.mulf %196, %174 : vector<1x8xf32>
      %198 = arith.addf %193, %197 : vector<1x8xf32>
      %cst_50 = arith.constant 3.000000e+00 : f32
      %199 = vector.broadcast %cst_50 : f32 to vector<1x8xf32>
      %200 = arith.mulf %199, %134 : vector<1x8xf32>
      %201 = arith.subf %133, %200 : vector<1x8xf32>
      %202 = arith.mulf %129, %201 : vector<1x8xf32>
      %203 = arith.mulf %202, %176 : vector<1x8xf32>
      %204 = arith.addf %198, %203 : vector<1x8xf32>
      %205 = arith.mulf %7, %190 : vector<1x8xf32>
      %206 = arith.mulf %13, %204 : vector<1x8xf32>
      %207 = math.absf %205 : vector<1x8xf32>
      %208 = math.absf %206 : vector<1x8xf32>
      %209 = arith.maximumf %207, %208 : vector<1x8xf32>
      %cst_51 = arith.constant dense<0xFF800000> : vector<1xf32>
      %210 = vector.multi_reduction <maximumf>, %209, %cst_51 [1] : vector<1x8xf32> to vector<1xf32>
      %211 = vector.shape_cast %210 : vector<1xf32> to vector<1x1xf32>
      %cst_52 = arith.constant 9.99999997E-7 : f32
      %212 = vector.broadcast %cst_52 : f32 to vector<1x1xf32>
      %213 = arith.cmpf olt, %211, %212 : vector<1x1xf32>
      %214 = arith.extui %213 : vector<1x1xi1> to vector<1x1xi32>
      %215 = arith.sitofp %214 : vector<1x1xi32> to vector<1x1xf32>
      %216 = vector.shape_cast %122 : vector<1x1xf32> to vector<1x1xf32>
      %217 = vector.broadcast %216 : vector<1x1xf32> to vector<1x8xf32>
      %cst_53 = arith.constant 5.000000e-01 : f32
      %218 = vector.broadcast %cst_53 : f32 to vector<1x8xf32>
      %219 = arith.cmpf ogt, %217, %218 : vector<1x8xf32>
      %220 = arith.select %219, %120, %129 : vector<1x8xi1>, vector<1x8xf32>
      %221 = arith.select %219, %121, %132 : vector<1x8xi1>, vector<1x8xf32>
      %222 = arith.maximumf %122, %215 : vector<1x1xf32>
      %223 = arith.addi %arg6, %c1_i32 : i32
      %c1000_i32_54 = arith.constant 1000 : i32
      %224 = arith.cmpi slt, %223, %c1000_i32_54 : i32
      %225 = arith.extui %224 : i1 to i32
      %226 = arith.sitofp %225 : i32 to f32
      %227 = vector.broadcast %226 : f32 to vector<1x8xf32>
      %228 = arith.mulf %227, %205 : vector<1x8xf32>
      %229 = arith.subf %129, %228 : vector<1x8xf32>
      %230 = vector.broadcast %226 : f32 to vector<1x8xf32>
      %231 = arith.mulf %230, %206 : vector<1x8xf32>
      %232 = arith.subf %132, %231 : vector<1x8xf32>
      %c2_i32 = arith.constant 2 : i32
      %233 = arith.mulf %229, %229 : vector<1x8xf32>
      %234 = arith.mulf %232, %232 : vector<1x8xf32>
      %235 = arith.mulf %229, %232 : vector<1x8xf32>
      %236 = arith.addf %233, %234 : vector<1x8xf32>
      %237 = arith.mulf %233, %234 : vector<1x8xf32>
      %238 = arith.subf %233, %234 : vector<1x8xf32>
      %239 = arith.mulf %235, %238 : vector<1x8xf32>
      %240 = vector.broadcast %236 : vector<1x8xf32> to vector<4x8xf32>
      %241 = arith.mulf %240, %16 : vector<4x8xf32>
      %242 = vector.broadcast %237 : vector<1x8xf32> to vector<4x8xf32>
      %243 = arith.mulf %242, %19 : vector<4x8xf32>
      %244 = arith.addf %241, %243 : vector<4x8xf32>
      %245 = vector.broadcast %239 : vector<1x8xf32> to vector<4x8xf32>
      %246 = arith.mulf %245, %22 : vector<4x8xf32>
      %247 = arith.addf %244, %246 : vector<4x8xf32>
      %cst_55 = arith.constant dense<0xFF800000> : vector<8xf32>
      %248 = vector.multi_reduction <maximumf>, %247, %cst_55 [0] : vector<4x8xf32> to vector<8xf32>
      %249 = vector.shape_cast %248 : vector<8xf32> to vector<1x8xf32>
      %250 = vector.broadcast %249 : vector<1x8xf32> to vector<4x8xf32>
      %251 = arith.subf %247, %250 : vector<4x8xf32>
      %252 = math.exp %251 : vector<4x8xf32>
      %cst_56 = arith.constant dense<0.000000e+00> : vector<8xf32>
      %253 = vector.multi_reduction <add>, %252, %cst_56 [0] : vector<4x8xf32> to vector<8xf32>
      %254 = vector.shape_cast %253 : vector<8xf32> to vector<1x8xf32>
      %255 = arith.mulf %252, %16 : vector<4x8xf32>
      %cst_57 = arith.constant dense<0.000000e+00> : vector<8xf32>
      %256 = vector.multi_reduction <add>, %255, %cst_57 [0] : vector<4x8xf32> to vector<8xf32>
      %257 = vector.shape_cast %256 : vector<8xf32> to vector<1x8xf32>
      %258 = arith.mulf %252, %19 : vector<4x8xf32>
      %cst_58 = arith.constant dense<0.000000e+00> : vector<8xf32>
      %259 = vector.multi_reduction <add>, %258, %cst_58 [0] : vector<4x8xf32> to vector<8xf32>
      %260 = vector.shape_cast %259 : vector<8xf32> to vector<1x8xf32>
      %261 = arith.mulf %252, %22 : vector<4x8xf32>
      %cst_59 = arith.constant dense<0.000000e+00> : vector<8xf32>
      %262 = vector.multi_reduction <add>, %261, %cst_59 [0] : vector<4x8xf32> to vector<8xf32>
      %263 = vector.shape_cast %262 : vector<8xf32> to vector<1x8xf32>
      %264 = tpu.reciprocal %254 {approx = true} : vector<1x8xf32> -> vector<1x8xf32>
      %265 = arith.mulf %254, %264 : vector<1x8xf32>
      %cst_60 = arith.constant 2.000000e+00 : f32
      %266 = vector.broadcast %cst_60 : f32 to vector<1x8xf32>
      %267 = arith.subf %266, %265 : vector<1x8xf32>
      %268 = arith.mulf %264, %267 : vector<1x8xf32>
      %269 = vector.broadcast %cst_17 : f32 to vector<1x8xf32>
      %270 = arith.mulf %268, %269 : vector<1x8xf32>
      %271 = arith.mulf %257, %270 : vector<1x8xf32>
      %272 = arith.subf %236, %271 : vector<1x8xf32>
      %273 = arith.mulf %260, %270 : vector<1x8xf32>
      %274 = arith.subf %237, %273 : vector<1x8xf32>
      %275 = arith.mulf %263, %270 : vector<1x8xf32>
      %276 = arith.subf %239, %275 : vector<1x8xf32>
      %cst_61 = arith.constant 2.000000e+00 : f32
      %277 = vector.broadcast %cst_61 : f32 to vector<1x8xf32>
      %278 = arith.mulf %277, %229 : vector<1x8xf32>
      %279 = arith.mulf %278, %272 : vector<1x8xf32>
      %cst_62 = arith.constant 2.000000e+00 : f32
      %280 = vector.broadcast %cst_62 : f32 to vector<1x8xf32>
      %281 = arith.mulf %280, %229 : vector<1x8xf32>
      %282 = arith.mulf %281, %234 : vector<1x8xf32>
      %283 = arith.mulf %282, %274 : vector<1x8xf32>
      %284 = arith.addf %279, %283 : vector<1x8xf32>
      %cst_63 = arith.constant 3.000000e+00 : f32
      %285 = vector.broadcast %cst_63 : f32 to vector<1x8xf32>
      %286 = arith.mulf %285, %233 : vector<1x8xf32>
      %287 = arith.subf %286, %234 : vector<1x8xf32>
      %288 = arith.mulf %232, %287 : vector<1x8xf32>
      %289 = arith.mulf %288, %276 : vector<1x8xf32>
      %290 = arith.addf %284, %289 : vector<1x8xf32>
      %cst_64 = arith.constant 2.000000e+00 : f32
      %291 = vector.broadcast %cst_64 : f32 to vector<1x8xf32>
      %292 = arith.mulf %291, %232 : vector<1x8xf32>
      %293 = arith.mulf %292, %272 : vector<1x8xf32>
      %cst_65 = arith.constant 2.000000e+00 : f32
      %294 = vector.broadcast %cst_65 : f32 to vector<1x8xf32>
      %295 = arith.mulf %294, %233 : vector<1x8xf32>
      %296 = arith.mulf %295, %232 : vector<1x8xf32>
      %297 = arith.mulf %296, %274 : vector<1x8xf32>
      %298 = arith.addf %293, %297 : vector<1x8xf32>
      %cst_66 = arith.constant 3.000000e+00 : f32
      %299 = vector.broadcast %cst_66 : f32 to vector<1x8xf32>
      %300 = arith.mulf %299, %234 : vector<1x8xf32>
      %301 = arith.subf %233, %300 : vector<1x8xf32>
      %302 = arith.mulf %229, %301 : vector<1x8xf32>
      %303 = arith.mulf %302, %276 : vector<1x8xf32>
      %304 = arith.addf %298, %303 : vector<1x8xf32>
      %305 = arith.mulf %7, %290 : vector<1x8xf32>
      %306 = arith.mulf %13, %304 : vector<1x8xf32>
      %307 = math.absf %305 : vector<1x8xf32>
      %308 = math.absf %306 : vector<1x8xf32>
      %309 = arith.maximumf %307, %308 : vector<1x8xf32>
      %cst_67 = arith.constant dense<0xFF800000> : vector<1xf32>
      %310 = vector.multi_reduction <maximumf>, %309, %cst_67 [1] : vector<1x8xf32> to vector<1xf32>
      %311 = vector.shape_cast %310 : vector<1xf32> to vector<1x1xf32>
      %cst_68 = arith.constant 9.99999997E-7 : f32
      %312 = vector.broadcast %cst_68 : f32 to vector<1x1xf32>
      %313 = arith.cmpf olt, %311, %312 : vector<1x1xf32>
      %314 = arith.extui %313 : vector<1x1xi1> to vector<1x1xi32>
      %315 = arith.sitofp %314 : vector<1x1xi32> to vector<1x1xf32>
      %316 = vector.shape_cast %222 : vector<1x1xf32> to vector<1x1xf32>
      %317 = vector.broadcast %316 : vector<1x1xf32> to vector<1x8xf32>
      %cst_69 = arith.constant 5.000000e-01 : f32
      %318 = vector.broadcast %cst_69 : f32 to vector<1x8xf32>
      %319 = arith.cmpf ogt, %317, %318 : vector<1x8xf32>
      %320 = arith.select %319, %220, %229 : vector<1x8xi1>, vector<1x8xf32>
      %321 = arith.select %319, %221, %232 : vector<1x8xi1>, vector<1x8xf32>
      %322 = arith.maximumf %222, %315 : vector<1x1xf32>
      %323 = arith.addi %arg6, %c2_i32 : i32
      %c1000_i32_70 = arith.constant 1000 : i32
      %324 = arith.cmpi slt, %323, %c1000_i32_70 : i32
      %325 = arith.extui %324 : i1 to i32
      %326 = arith.sitofp %325 : i32 to f32
      %327 = vector.broadcast %326 : f32 to vector<1x8xf32>
      %328 = arith.mulf %327, %305 : vector<1x8xf32>
      %329 = arith.subf %229, %328 : vector<1x8xf32>
      %330 = vector.broadcast %326 : f32 to vector<1x8xf32>
      %331 = arith.mulf %330, %306 : vector<1x8xf32>
      %332 = arith.subf %232, %331 : vector<1x8xf32>
      %c3_i32 = arith.constant 3 : i32
      %333 = arith.mulf %329, %329 : vector<1x8xf32>
      %334 = arith.mulf %332, %332 : vector<1x8xf32>
      %335 = arith.mulf %329, %332 : vector<1x8xf32>
      %336 = arith.addf %333, %334 : vector<1x8xf32>
      %337 = arith.mulf %333, %334 : vector<1x8xf32>
      %338 = arith.subf %333, %334 : vector<1x8xf32>
      %339 = arith.mulf %335, %338 : vector<1x8xf32>
      %340 = vector.broadcast %336 : vector<1x8xf32> to vector<4x8xf32>
      %341 = arith.mulf %340, %16 : vector<4x8xf32>
      %342 = vector.broadcast %337 : vector<1x8xf32> to vector<4x8xf32>
      %343 = arith.mulf %342, %19 : vector<4x8xf32>
      %344 = arith.addf %341, %343 : vector<4x8xf32>
      %345 = vector.broadcast %339 : vector<1x8xf32> to vector<4x8xf32>
      %346 = arith.mulf %345, %22 : vector<4x8xf32>
      %347 = arith.addf %344, %346 : vector<4x8xf32>
      %cst_71 = arith.constant dense<0xFF800000> : vector<8xf32>
      %348 = vector.multi_reduction <maximumf>, %347, %cst_71 [0] : vector<4x8xf32> to vector<8xf32>
      %349 = vector.shape_cast %348 : vector<8xf32> to vector<1x8xf32>
      %350 = vector.broadcast %349 : vector<1x8xf32> to vector<4x8xf32>
      %351 = arith.subf %347, %350 : vector<4x8xf32>
      %352 = math.exp %351 : vector<4x8xf32>
      %cst_72 = arith.constant dense<0.000000e+00> : vector<8xf32>
      %353 = vector.multi_reduction <add>, %352, %cst_72 [0] : vector<4x8xf32> to vector<8xf32>
      %354 = vector.shape_cast %353 : vector<8xf32> to vector<1x8xf32>
      %355 = arith.mulf %352, %16 : vector<4x8xf32>
      %cst_73 = arith.constant dense<0.000000e+00> : vector<8xf32>
      %356 = vector.multi_reduction <add>, %355, %cst_73 [0] : vector<4x8xf32> to vector<8xf32>
      %357 = vector.shape_cast %356 : vector<8xf32> to vector<1x8xf32>
      %358 = arith.mulf %352, %19 : vector<4x8xf32>
      %cst_74 = arith.constant dense<0.000000e+00> : vector<8xf32>
      %359 = vector.multi_reduction <add>, %358, %cst_74 [0] : vector<4x8xf32> to vector<8xf32>
      %360 = vector.shape_cast %359 : vector<8xf32> to vector<1x8xf32>
      %361 = arith.mulf %352, %22 : vector<4x8xf32>
      %cst_75 = arith.constant dense<0.000000e+00> : vector<8xf32>
      %362 = vector.multi_reduction <add>, %361, %cst_75 [0] : vector<4x8xf32> to vector<8xf32>
      %363 = vector.shape_cast %362 : vector<8xf32> to vector<1x8xf32>
      %364 = tpu.reciprocal %354 {approx = true} : vector<1x8xf32> -> vector<1x8xf32>
      %365 = arith.mulf %354, %364 : vector<1x8xf32>
      %cst_76 = arith.constant 2.000000e+00 : f32
      %366 = vector.broadcast %cst_76 : f32 to vector<1x8xf32>
      %367 = arith.subf %366, %365 : vector<1x8xf32>
      %368 = arith.mulf %364, %367 : vector<1x8xf32>
      %369 = vector.broadcast %cst_17 : f32 to vector<1x8xf32>
      %370 = arith.mulf %368, %369 : vector<1x8xf32>
      %371 = arith.mulf %357, %370 : vector<1x8xf32>
      %372 = arith.subf %336, %371 : vector<1x8xf32>
      %373 = arith.mulf %360, %370 : vector<1x8xf32>
      %374 = arith.subf %337, %373 : vector<1x8xf32>
      %375 = arith.mulf %363, %370 : vector<1x8xf32>
      %376 = arith.subf %339, %375 : vector<1x8xf32>
      %cst_77 = arith.constant 2.000000e+00 : f32
      %377 = vector.broadcast %cst_77 : f32 to vector<1x8xf32>
      %378 = arith.mulf %377, %329 : vector<1x8xf32>
      %379 = arith.mulf %378, %372 : vector<1x8xf32>
      %cst_78 = arith.constant 2.000000e+00 : f32
      %380 = vector.broadcast %cst_78 : f32 to vector<1x8xf32>
      %381 = arith.mulf %380, %329 : vector<1x8xf32>
      %382 = arith.mulf %381, %334 : vector<1x8xf32>
      %383 = arith.mulf %382, %374 : vector<1x8xf32>
      %384 = arith.addf %379, %383 : vector<1x8xf32>
      %cst_79 = arith.constant 3.000000e+00 : f32
      %385 = vector.broadcast %cst_79 : f32 to vector<1x8xf32>
      %386 = arith.mulf %385, %333 : vector<1x8xf32>
      %387 = arith.subf %386, %334 : vector<1x8xf32>
      %388 = arith.mulf %332, %387 : vector<1x8xf32>
      %389 = arith.mulf %388, %376 : vector<1x8xf32>
      %390 = arith.addf %384, %389 : vector<1x8xf32>
      %cst_80 = arith.constant 2.000000e+00 : f32
      %391 = vector.broadcast %cst_80 : f32 to vector<1x8xf32>
      %392 = arith.mulf %391, %332 : vector<1x8xf32>
      %393 = arith.mulf %392, %372 : vector<1x8xf32>
      %cst_81 = arith.constant 2.000000e+00 : f32
      %394 = vector.broadcast %cst_81 : f32 to vector<1x8xf32>
      %395 = arith.mulf %394, %333 : vector<1x8xf32>
      %396 = arith.mulf %395, %332 : vector<1x8xf32>
      %397 = arith.mulf %396, %374 : vector<1x8xf32>
      %398 = arith.addf %393, %397 : vector<1x8xf32>
      %cst_82 = arith.constant 3.000000e+00 : f32
      %399 = vector.broadcast %cst_82 : f32 to vector<1x8xf32>
      %400 = arith.mulf %399, %334 : vector<1x8xf32>
      %401 = arith.subf %333, %400 : vector<1x8xf32>
      %402 = arith.mulf %329, %401 : vector<1x8xf32>
      %403 = arith.mulf %402, %376 : vector<1x8xf32>
      %404 = arith.addf %398, %403 : vector<1x8xf32>
      %405 = arith.mulf %7, %390 : vector<1x8xf32>
      %406 = arith.mulf %13, %404 : vector<1x8xf32>
      %407 = math.absf %405 : vector<1x8xf32>
      %408 = math.absf %406 : vector<1x8xf32>
      %409 = arith.maximumf %407, %408 : vector<1x8xf32>
      %cst_83 = arith.constant dense<0xFF800000> : vector<1xf32>
      %410 = vector.multi_reduction <maximumf>, %409, %cst_83 [1] : vector<1x8xf32> to vector<1xf32>
      %411 = vector.shape_cast %410 : vector<1xf32> to vector<1x1xf32>
      %cst_84 = arith.constant 9.99999997E-7 : f32
      %412 = vector.broadcast %cst_84 : f32 to vector<1x1xf32>
      %413 = arith.cmpf olt, %411, %412 : vector<1x1xf32>
      %414 = arith.extui %413 : vector<1x1xi1> to vector<1x1xi32>
      %415 = arith.sitofp %414 : vector<1x1xi32> to vector<1x1xf32>
      %416 = vector.shape_cast %322 : vector<1x1xf32> to vector<1x1xf32>
      %417 = vector.broadcast %416 : vector<1x1xf32> to vector<1x8xf32>
      %cst_85 = arith.constant 5.000000e-01 : f32
      %418 = vector.broadcast %cst_85 : f32 to vector<1x8xf32>
      %419 = arith.cmpf ogt, %417, %418 : vector<1x8xf32>
      %420 = arith.select %419, %320, %329 : vector<1x8xi1>, vector<1x8xf32>
      %421 = arith.select %419, %321, %332 : vector<1x8xi1>, vector<1x8xf32>
      %422 = arith.maximumf %322, %415 : vector<1x1xf32>
      %423 = arith.addi %arg6, %c3_i32 : i32
      %c1000_i32_86 = arith.constant 1000 : i32
      %424 = arith.cmpi slt, %423, %c1000_i32_86 : i32
      %425 = arith.extui %424 : i1 to i32
      %426 = arith.sitofp %425 : i32 to f32
      %427 = vector.broadcast %426 : f32 to vector<1x8xf32>
      %428 = arith.mulf %427, %405 : vector<1x8xf32>
      %429 = arith.subf %329, %428 : vector<1x8xf32>
      %430 = vector.broadcast %426 : f32 to vector<1x8xf32>
      %431 = arith.mulf %430, %406 : vector<1x8xf32>
      %432 = arith.subf %332, %431 : vector<1x8xf32>
      %c4_i32 = arith.constant 4 : i32
      %433 = arith.mulf %429, %429 : vector<1x8xf32>
      %434 = arith.mulf %432, %432 : vector<1x8xf32>
      %435 = arith.mulf %429, %432 : vector<1x8xf32>
      %436 = arith.addf %433, %434 : vector<1x8xf32>
      %437 = arith.mulf %433, %434 : vector<1x8xf32>
      %438 = arith.subf %433, %434 : vector<1x8xf32>
      %439 = arith.mulf %435, %438 : vector<1x8xf32>
      %440 = vector.broadcast %436 : vector<1x8xf32> to vector<4x8xf32>
      %441 = arith.mulf %440, %16 : vector<4x8xf32>
      %442 = vector.broadcast %437 : vector<1x8xf32> to vector<4x8xf32>
      %443 = arith.mulf %442, %19 : vector<4x8xf32>
      %444 = arith.addf %441, %443 : vector<4x8xf32>
      %445 = vector.broadcast %439 : vector<1x8xf32> to vector<4x8xf32>
      %446 = arith.mulf %445, %22 : vector<4x8xf32>
      %447 = arith.addf %444, %446 : vector<4x8xf32>
      %cst_87 = arith.constant dense<0xFF800000> : vector<8xf32>
      %448 = vector.multi_reduction <maximumf>, %447, %cst_87 [0] : vector<4x8xf32> to vector<8xf32>
      %449 = vector.shape_cast %448 : vector<8xf32> to vector<1x8xf32>
      %450 = vector.broadcast %449 : vector<1x8xf32> to vector<4x8xf32>
      %451 = arith.subf %447, %450 : vector<4x8xf32>
      %452 = math.exp %451 : vector<4x8xf32>
      %cst_88 = arith.constant dense<0.000000e+00> : vector<8xf32>
      %453 = vector.multi_reduction <add>, %452, %cst_88 [0] : vector<4x8xf32> to vector<8xf32>
      %454 = vector.shape_cast %453 : vector<8xf32> to vector<1x8xf32>
      %455 = arith.mulf %452, %16 : vector<4x8xf32>
      %cst_89 = arith.constant dense<0.000000e+00> : vector<8xf32>
      %456 = vector.multi_reduction <add>, %455, %cst_89 [0] : vector<4x8xf32> to vector<8xf32>
      %457 = vector.shape_cast %456 : vector<8xf32> to vector<1x8xf32>
      %458 = arith.mulf %452, %19 : vector<4x8xf32>
      %cst_90 = arith.constant dense<0.000000e+00> : vector<8xf32>
      %459 = vector.multi_reduction <add>, %458, %cst_90 [0] : vector<4x8xf32> to vector<8xf32>
      %460 = vector.shape_cast %459 : vector<8xf32> to vector<1x8xf32>
      %461 = arith.mulf %452, %22 : vector<4x8xf32>
      %cst_91 = arith.constant dense<0.000000e+00> : vector<8xf32>
      %462 = vector.multi_reduction <add>, %461, %cst_91 [0] : vector<4x8xf32> to vector<8xf32>
      %463 = vector.shape_cast %462 : vector<8xf32> to vector<1x8xf32>
      %464 = tpu.reciprocal %454 {approx = true} : vector<1x8xf32> -> vector<1x8xf32>
      %465 = arith.mulf %454, %464 : vector<1x8xf32>
      %cst_92 = arith.constant 2.000000e+00 : f32
      %466 = vector.broadcast %cst_92 : f32 to vector<1x8xf32>
      %467 = arith.subf %466, %465 : vector<1x8xf32>
      %468 = arith.mulf %464, %467 : vector<1x8xf32>
      %469 = vector.broadcast %cst_17 : f32 to vector<1x8xf32>
      %470 = arith.mulf %468, %469 : vector<1x8xf32>
      %471 = arith.mulf %457, %470 : vector<1x8xf32>
      %472 = arith.subf %436, %471 : vector<1x8xf32>
      %473 = arith.mulf %460, %470 : vector<1x8xf32>
      %474 = arith.subf %437, %473 : vector<1x8xf32>
      %475 = arith.mulf %463, %470 : vector<1x8xf32>
      %476 = arith.subf %439, %475 : vector<1x8xf32>
      %cst_93 = arith.constant 2.000000e+00 : f32
      %477 = vector.broadcast %cst_93 : f32 to vector<1x8xf32>
      %478 = arith.mulf %477, %429 : vector<1x8xf32>
      %479 = arith.mulf %478, %472 : vector<1x8xf32>
      %cst_94 = arith.constant 2.000000e+00 : f32
      %480 = vector.broadcast %cst_94 : f32 to vector<1x8xf32>
      %481 = arith.mulf %480, %429 : vector<1x8xf32>
      %482 = arith.mulf %481, %434 : vector<1x8xf32>
      %483 = arith.mulf %482, %474 : vector<1x8xf32>
      %484 = arith.addf %479, %483 : vector<1x8xf32>
      %cst_95 = arith.constant 3.000000e+00 : f32
      %485 = vector.broadcast %cst_95 : f32 to vector<1x8xf32>
      %486 = arith.mulf %485, %433 : vector<1x8xf32>
      %487 = arith.subf %486, %434 : vector<1x8xf32>
      %488 = arith.mulf %432, %487 : vector<1x8xf32>
      %489 = arith.mulf %488, %476 : vector<1x8xf32>
      %490 = arith.addf %484, %489 : vector<1x8xf32>
      %cst_96 = arith.constant 2.000000e+00 : f32
      %491 = vector.broadcast %cst_96 : f32 to vector<1x8xf32>
      %492 = arith.mulf %491, %432 : vector<1x8xf32>
      %493 = arith.mulf %492, %472 : vector<1x8xf32>
      %cst_97 = arith.constant 2.000000e+00 : f32
      %494 = vector.broadcast %cst_97 : f32 to vector<1x8xf32>
      %495 = arith.mulf %494, %433 : vector<1x8xf32>
      %496 = arith.mulf %495, %432 : vector<1x8xf32>
      %497 = arith.mulf %496, %474 : vector<1x8xf32>
      %498 = arith.addf %493, %497 : vector<1x8xf32>
      %cst_98 = arith.constant 3.000000e+00 : f32
      %499 = vector.broadcast %cst_98 : f32 to vector<1x8xf32>
      %500 = arith.mulf %499, %434 : vector<1x8xf32>
      %501 = arith.subf %433, %500 : vector<1x8xf32>
      %502 = arith.mulf %429, %501 : vector<1x8xf32>
      %503 = arith.mulf %502, %476 : vector<1x8xf32>
      %504 = arith.addf %498, %503 : vector<1x8xf32>
      %505 = arith.mulf %7, %490 : vector<1x8xf32>
      %506 = arith.mulf %13, %504 : vector<1x8xf32>
      %507 = math.absf %505 : vector<1x8xf32>
      %508 = math.absf %506 : vector<1x8xf32>
      %509 = arith.maximumf %507, %508 : vector<1x8xf32>
      %cst_99 = arith.constant dense<0xFF800000> : vector<1xf32>
      %510 = vector.multi_reduction <maximumf>, %509, %cst_99 [1] : vector<1x8xf32> to vector<1xf32>
      %511 = vector.shape_cast %510 : vector<1xf32> to vector<1x1xf32>
      %cst_100 = arith.constant 9.99999997E-7 : f32
      %512 = vector.broadcast %cst_100 : f32 to vector<1x1xf32>
      %513 = arith.cmpf olt, %511, %512 : vector<1x1xf32>
      %514 = arith.extui %513 : vector<1x1xi1> to vector<1x1xi32>
      %515 = arith.sitofp %514 : vector<1x1xi32> to vector<1x1xf32>
      %516 = vector.shape_cast %422 : vector<1x1xf32> to vector<1x1xf32>
      %517 = vector.broadcast %516 : vector<1x1xf32> to vector<1x8xf32>
      %cst_101 = arith.constant 5.000000e-01 : f32
      %518 = vector.broadcast %cst_101 : f32 to vector<1x8xf32>
      %519 = arith.cmpf ogt, %517, %518 : vector<1x8xf32>
      %520 = arith.select %519, %420, %429 : vector<1x8xi1>, vector<1x8xf32>
      %521 = arith.select %519, %421, %432 : vector<1x8xi1>, vector<1x8xf32>
      %522 = arith.maximumf %422, %515 : vector<1x1xf32>
      %523 = arith.addi %arg6, %c4_i32 : i32
      %c1000_i32_102 = arith.constant 1000 : i32
      %524 = arith.cmpi slt, %523, %c1000_i32_102 : i32
      %525 = arith.extui %524 : i1 to i32
      %526 = arith.sitofp %525 : i32 to f32
      %527 = vector.broadcast %526 : f32 to vector<1x8xf32>
      %528 = arith.mulf %527, %505 : vector<1x8xf32>
      %529 = arith.subf %429, %528 : vector<1x8xf32>
      %530 = vector.broadcast %526 : f32 to vector<1x8xf32>
      %531 = arith.mulf %530, %506 : vector<1x8xf32>
      %532 = arith.subf %432, %531 : vector<1x8xf32>
      %c5_i32 = arith.constant 5 : i32
      %533 = arith.mulf %529, %529 : vector<1x8xf32>
      %534 = arith.mulf %532, %532 : vector<1x8xf32>
      %535 = arith.mulf %529, %532 : vector<1x8xf32>
      %536 = arith.addf %533, %534 : vector<1x8xf32>
      %537 = arith.mulf %533, %534 : vector<1x8xf32>
      %538 = arith.subf %533, %534 : vector<1x8xf32>
      %539 = arith.mulf %535, %538 : vector<1x8xf32>
      %540 = vector.broadcast %536 : vector<1x8xf32> to vector<4x8xf32>
      %541 = arith.mulf %540, %16 : vector<4x8xf32>
      %542 = vector.broadcast %537 : vector<1x8xf32> to vector<4x8xf32>
      %543 = arith.mulf %542, %19 : vector<4x8xf32>
      %544 = arith.addf %541, %543 : vector<4x8xf32>
      %545 = vector.broadcast %539 : vector<1x8xf32> to vector<4x8xf32>
      %546 = arith.mulf %545, %22 : vector<4x8xf32>
      %547 = arith.addf %544, %546 : vector<4x8xf32>
      %cst_103 = arith.constant dense<0xFF800000> : vector<8xf32>
      %548 = vector.multi_reduction <maximumf>, %547, %cst_103 [0] : vector<4x8xf32> to vector<8xf32>
      %549 = vector.shape_cast %548 : vector<8xf32> to vector<1x8xf32>
      %550 = vector.broadcast %549 : vector<1x8xf32> to vector<4x8xf32>
      %551 = arith.subf %547, %550 : vector<4x8xf32>
      %552 = math.exp %551 : vector<4x8xf32>
      %cst_104 = arith.constant dense<0.000000e+00> : vector<8xf32>
      %553 = vector.multi_reduction <add>, %552, %cst_104 [0] : vector<4x8xf32> to vector<8xf32>
      %554 = vector.shape_cast %553 : vector<8xf32> to vector<1x8xf32>
      %555 = arith.mulf %552, %16 : vector<4x8xf32>
      %cst_105 = arith.constant dense<0.000000e+00> : vector<8xf32>
      %556 = vector.multi_reduction <add>, %555, %cst_105 [0] : vector<4x8xf32> to vector<8xf32>
      %557 = vector.shape_cast %556 : vector<8xf32> to vector<1x8xf32>
      %558 = arith.mulf %552, %19 : vector<4x8xf32>
      %cst_106 = arith.constant dense<0.000000e+00> : vector<8xf32>
      %559 = vector.multi_reduction <add>, %558, %cst_106 [0] : vector<4x8xf32> to vector<8xf32>
      %560 = vector.shape_cast %559 : vector<8xf32> to vector<1x8xf32>
      %561 = arith.mulf %552, %22 : vector<4x8xf32>
      %cst_107 = arith.constant dense<0.000000e+00> : vector<8xf32>
      %562 = vector.multi_reduction <add>, %561, %cst_107 [0] : vector<4x8xf32> to vector<8xf32>
      %563 = vector.shape_cast %562 : vector<8xf32> to vector<1x8xf32>
      %564 = tpu.reciprocal %554 {approx = true} : vector<1x8xf32> -> vector<1x8xf32>
      %565 = arith.mulf %554, %564 : vector<1x8xf32>
      %cst_108 = arith.constant 2.000000e+00 : f32
      %566 = vector.broadcast %cst_108 : f32 to vector<1x8xf32>
      %567 = arith.subf %566, %565 : vector<1x8xf32>
      %568 = arith.mulf %564, %567 : vector<1x8xf32>
      %569 = vector.broadcast %cst_17 : f32 to vector<1x8xf32>
      %570 = arith.mulf %568, %569 : vector<1x8xf32>
      %571 = arith.mulf %557, %570 : vector<1x8xf32>
      %572 = arith.subf %536, %571 : vector<1x8xf32>
      %573 = arith.mulf %560, %570 : vector<1x8xf32>
      %574 = arith.subf %537, %573 : vector<1x8xf32>
      %575 = arith.mulf %563, %570 : vector<1x8xf32>
      %576 = arith.subf %539, %575 : vector<1x8xf32>
      %cst_109 = arith.constant 2.000000e+00 : f32
      %577 = vector.broadcast %cst_109 : f32 to vector<1x8xf32>
      %578 = arith.mulf %577, %529 : vector<1x8xf32>
      %579 = arith.mulf %578, %572 : vector<1x8xf32>
      %cst_110 = arith.constant 2.000000e+00 : f32
      %580 = vector.broadcast %cst_110 : f32 to vector<1x8xf32>
      %581 = arith.mulf %580, %529 : vector<1x8xf32>
      %582 = arith.mulf %581, %534 : vector<1x8xf32>
      %583 = arith.mulf %582, %574 : vector<1x8xf32>
      %584 = arith.addf %579, %583 : vector<1x8xf32>
      %cst_111 = arith.constant 3.000000e+00 : f32
      %585 = vector.broadcast %cst_111 : f32 to vector<1x8xf32>
      %586 = arith.mulf %585, %533 : vector<1x8xf32>
      %587 = arith.subf %586, %534 : vector<1x8xf32>
      %588 = arith.mulf %532, %587 : vector<1x8xf32>
      %589 = arith.mulf %588, %576 : vector<1x8xf32>
      %590 = arith.addf %584, %589 : vector<1x8xf32>
      %cst_112 = arith.constant 2.000000e+00 : f32
      %591 = vector.broadcast %cst_112 : f32 to vector<1x8xf32>
      %592 = arith.mulf %591, %532 : vector<1x8xf32>
      %593 = arith.mulf %592, %572 : vector<1x8xf32>
      %cst_113 = arith.constant 2.000000e+00 : f32
      %594 = vector.broadcast %cst_113 : f32 to vector<1x8xf32>
      %595 = arith.mulf %594, %533 : vector<1x8xf32>
      %596 = arith.mulf %595, %532 : vector<1x8xf32>
      %597 = arith.mulf %596, %574 : vector<1x8xf32>
      %598 = arith.addf %593, %597 : vector<1x8xf32>
      %cst_114 = arith.constant 3.000000e+00 : f32
      %599 = vector.broadcast %cst_114 : f32 to vector<1x8xf32>
      %600 = arith.mulf %599, %534 : vector<1x8xf32>
      %601 = arith.subf %533, %600 : vector<1x8xf32>
      %602 = arith.mulf %529, %601 : vector<1x8xf32>
      %603 = arith.mulf %602, %576 : vector<1x8xf32>
      %604 = arith.addf %598, %603 : vector<1x8xf32>
      %605 = arith.mulf %7, %590 : vector<1x8xf32>
      %606 = arith.mulf %13, %604 : vector<1x8xf32>
      %607 = math.absf %605 : vector<1x8xf32>
      %608 = math.absf %606 : vector<1x8xf32>
      %609 = arith.maximumf %607, %608 : vector<1x8xf32>
      %cst_115 = arith.constant dense<0xFF800000> : vector<1xf32>
      %610 = vector.multi_reduction <maximumf>, %609, %cst_115 [1] : vector<1x8xf32> to vector<1xf32>
      %611 = vector.shape_cast %610 : vector<1xf32> to vector<1x1xf32>
      %cst_116 = arith.constant 9.99999997E-7 : f32
      %612 = vector.broadcast %cst_116 : f32 to vector<1x1xf32>
      %613 = arith.cmpf olt, %611, %612 : vector<1x1xf32>
      %614 = arith.extui %613 : vector<1x1xi1> to vector<1x1xi32>
      %615 = arith.sitofp %614 : vector<1x1xi32> to vector<1x1xf32>
      %616 = vector.shape_cast %522 : vector<1x1xf32> to vector<1x1xf32>
      %617 = vector.broadcast %616 : vector<1x1xf32> to vector<1x8xf32>
      %cst_117 = arith.constant 5.000000e-01 : f32
      %618 = vector.broadcast %cst_117 : f32 to vector<1x8xf32>
      %619 = arith.cmpf ogt, %617, %618 : vector<1x8xf32>
      %620 = arith.select %619, %520, %529 : vector<1x8xi1>, vector<1x8xf32>
      %621 = arith.select %619, %521, %532 : vector<1x8xi1>, vector<1x8xf32>
      %622 = arith.maximumf %522, %615 : vector<1x1xf32>
      %623 = arith.addi %arg6, %c5_i32 : i32
      %c1000_i32_118 = arith.constant 1000 : i32
      %624 = arith.cmpi slt, %623, %c1000_i32_118 : i32
      %625 = arith.extui %624 : i1 to i32
      %626 = arith.sitofp %625 : i32 to f32
      %627 = vector.broadcast %626 : f32 to vector<1x8xf32>
      %628 = arith.mulf %627, %605 : vector<1x8xf32>
      %629 = arith.subf %529, %628 : vector<1x8xf32>
      %630 = vector.broadcast %626 : f32 to vector<1x8xf32>
      %631 = arith.mulf %630, %606 : vector<1x8xf32>
      %632 = arith.subf %532, %631 : vector<1x8xf32>
      %c6_i32 = arith.constant 6 : i32
      %633 = arith.mulf %629, %629 : vector<1x8xf32>
      %634 = arith.mulf %632, %632 : vector<1x8xf32>
      %635 = arith.mulf %629, %632 : vector<1x8xf32>
      %636 = arith.addf %633, %634 : vector<1x8xf32>
      %637 = arith.mulf %633, %634 : vector<1x8xf32>
      %638 = arith.subf %633, %634 : vector<1x8xf32>
      %639 = arith.mulf %635, %638 : vector<1x8xf32>
      %640 = vector.broadcast %636 : vector<1x8xf32> to vector<4x8xf32>
      %641 = arith.mulf %640, %16 : vector<4x8xf32>
      %642 = vector.broadcast %637 : vector<1x8xf32> to vector<4x8xf32>
      %643 = arith.mulf %642, %19 : vector<4x8xf32>
      %644 = arith.addf %641, %643 : vector<4x8xf32>
      %645 = vector.broadcast %639 : vector<1x8xf32> to vector<4x8xf32>
      %646 = arith.mulf %645, %22 : vector<4x8xf32>
      %647 = arith.addf %644, %646 : vector<4x8xf32>
      %cst_119 = arith.constant dense<0xFF800000> : vector<8xf32>
      %648 = vector.multi_reduction <maximumf>, %647, %cst_119 [0] : vector<4x8xf32> to vector<8xf32>
      %649 = vector.shape_cast %648 : vector<8xf32> to vector<1x8xf32>
      %650 = vector.broadcast %649 : vector<1x8xf32> to vector<4x8xf32>
      %651 = arith.subf %647, %650 : vector<4x8xf32>
      %652 = math.exp %651 : vector<4x8xf32>
      %cst_120 = arith.constant dense<0.000000e+00> : vector<8xf32>
      %653 = vector.multi_reduction <add>, %652, %cst_120 [0] : vector<4x8xf32> to vector<8xf32>
      %654 = vector.shape_cast %653 : vector<8xf32> to vector<1x8xf32>
      %655 = arith.mulf %652, %16 : vector<4x8xf32>
      %cst_121 = arith.constant dense<0.000000e+00> : vector<8xf32>
      %656 = vector.multi_reduction <add>, %655, %cst_121 [0] : vector<4x8xf32> to vector<8xf32>
      %657 = vector.shape_cast %656 : vector<8xf32> to vector<1x8xf32>
      %658 = arith.mulf %652, %19 : vector<4x8xf32>
      %cst_122 = arith.constant dense<0.000000e+00> : vector<8xf32>
      %659 = vector.multi_reduction <add>, %658, %cst_122 [0] : vector<4x8xf32> to vector<8xf32>
      %660 = vector.shape_cast %659 : vector<8xf32> to vector<1x8xf32>
      %661 = arith.mulf %652, %22 : vector<4x8xf32>
      %cst_123 = arith.constant dense<0.000000e+00> : vector<8xf32>
      %662 = vector.multi_reduction <add>, %661, %cst_123 [0] : vector<4x8xf32> to vector<8xf32>
      %663 = vector.shape_cast %662 : vector<8xf32> to vector<1x8xf32>
      %664 = tpu.reciprocal %654 {approx = true} : vector<1x8xf32> -> vector<1x8xf32>
      %665 = arith.mulf %654, %664 : vector<1x8xf32>
      %cst_124 = arith.constant 2.000000e+00 : f32
      %666 = vector.broadcast %cst_124 : f32 to vector<1x8xf32>
      %667 = arith.subf %666, %665 : vector<1x8xf32>
      %668 = arith.mulf %664, %667 : vector<1x8xf32>
      %669 = vector.broadcast %cst_17 : f32 to vector<1x8xf32>
      %670 = arith.mulf %668, %669 : vector<1x8xf32>
      %671 = arith.mulf %657, %670 : vector<1x8xf32>
      %672 = arith.subf %636, %671 : vector<1x8xf32>
      %673 = arith.mulf %660, %670 : vector<1x8xf32>
      %674 = arith.subf %637, %673 : vector<1x8xf32>
      %675 = arith.mulf %663, %670 : vector<1x8xf32>
      %676 = arith.subf %639, %675 : vector<1x8xf32>
      %cst_125 = arith.constant 2.000000e+00 : f32
      %677 = vector.broadcast %cst_125 : f32 to vector<1x8xf32>
      %678 = arith.mulf %677, %629 : vector<1x8xf32>
      %679 = arith.mulf %678, %672 : vector<1x8xf32>
      %cst_126 = arith.constant 2.000000e+00 : f32
      %680 = vector.broadcast %cst_126 : f32 to vector<1x8xf32>
      %681 = arith.mulf %680, %629 : vector<1x8xf32>
      %682 = arith.mulf %681, %634 : vector<1x8xf32>
      %683 = arith.mulf %682, %674 : vector<1x8xf32>
      %684 = arith.addf %679, %683 : vector<1x8xf32>
      %cst_127 = arith.constant 3.000000e+00 : f32
      %685 = vector.broadcast %cst_127 : f32 to vector<1x8xf32>
      %686 = arith.mulf %685, %633 : vector<1x8xf32>
      %687 = arith.subf %686, %634 : vector<1x8xf32>
      %688 = arith.mulf %632, %687 : vector<1x8xf32>
      %689 = arith.mulf %688, %676 : vector<1x8xf32>
      %690 = arith.addf %684, %689 : vector<1x8xf32>
      %cst_128 = arith.constant 2.000000e+00 : f32
      %691 = vector.broadcast %cst_128 : f32 to vector<1x8xf32>
      %692 = arith.mulf %691, %632 : vector<1x8xf32>
      %693 = arith.mulf %692, %672 : vector<1x8xf32>
      %cst_129 = arith.constant 2.000000e+00 : f32
      %694 = vector.broadcast %cst_129 : f32 to vector<1x8xf32>
      %695 = arith.mulf %694, %633 : vector<1x8xf32>
      %696 = arith.mulf %695, %632 : vector<1x8xf32>
      %697 = arith.mulf %696, %674 : vector<1x8xf32>
      %698 = arith.addf %693, %697 : vector<1x8xf32>
      %cst_130 = arith.constant 3.000000e+00 : f32
      %699 = vector.broadcast %cst_130 : f32 to vector<1x8xf32>
      %700 = arith.mulf %699, %634 : vector<1x8xf32>
      %701 = arith.subf %633, %700 : vector<1x8xf32>
      %702 = arith.mulf %629, %701 : vector<1x8xf32>
      %703 = arith.mulf %702, %676 : vector<1x8xf32>
      %704 = arith.addf %698, %703 : vector<1x8xf32>
      %705 = arith.mulf %7, %690 : vector<1x8xf32>
      %706 = arith.mulf %13, %704 : vector<1x8xf32>
      %707 = math.absf %705 : vector<1x8xf32>
      %708 = math.absf %706 : vector<1x8xf32>
      %709 = arith.maximumf %707, %708 : vector<1x8xf32>
      %cst_131 = arith.constant dense<0xFF800000> : vector<1xf32>
      %710 = vector.multi_reduction <maximumf>, %709, %cst_131 [1] : vector<1x8xf32> to vector<1xf32>
      %711 = vector.shape_cast %710 : vector<1xf32> to vector<1x1xf32>
      %cst_132 = arith.constant 9.99999997E-7 : f32
      %712 = vector.broadcast %cst_132 : f32 to vector<1x1xf32>
      %713 = arith.cmpf olt, %711, %712 : vector<1x1xf32>
      %714 = arith.extui %713 : vector<1x1xi1> to vector<1x1xi32>
      %715 = arith.sitofp %714 : vector<1x1xi32> to vector<1x1xf32>
      %716 = vector.shape_cast %622 : vector<1x1xf32> to vector<1x1xf32>
      %717 = vector.broadcast %716 : vector<1x1xf32> to vector<1x8xf32>
      %cst_133 = arith.constant 5.000000e-01 : f32
      %718 = vector.broadcast %cst_133 : f32 to vector<1x8xf32>
      %719 = arith.cmpf ogt, %717, %718 : vector<1x8xf32>
      %720 = arith.select %719, %620, %629 : vector<1x8xi1>, vector<1x8xf32>
      %721 = arith.select %719, %621, %632 : vector<1x8xi1>, vector<1x8xf32>
      %722 = arith.maximumf %622, %715 : vector<1x1xf32>
      %723 = arith.addi %arg6, %c6_i32 : i32
      %c1000_i32_134 = arith.constant 1000 : i32
      %724 = arith.cmpi slt, %723, %c1000_i32_134 : i32
      %725 = arith.extui %724 : i1 to i32
      %726 = arith.sitofp %725 : i32 to f32
      %727 = vector.broadcast %726 : f32 to vector<1x8xf32>
      %728 = arith.mulf %727, %705 : vector<1x8xf32>
      %729 = arith.subf %629, %728 : vector<1x8xf32>
      %730 = vector.broadcast %726 : f32 to vector<1x8xf32>
      %731 = arith.mulf %730, %706 : vector<1x8xf32>
      %732 = arith.subf %632, %731 : vector<1x8xf32>
      %c7_i32 = arith.constant 7 : i32
      %733 = arith.mulf %729, %729 : vector<1x8xf32>
      %734 = arith.mulf %732, %732 : vector<1x8xf32>
      %735 = arith.mulf %729, %732 : vector<1x8xf32>
      %736 = arith.addf %733, %734 : vector<1x8xf32>
      %737 = arith.mulf %733, %734 : vector<1x8xf32>
      %738 = arith.subf %733, %734 : vector<1x8xf32>
      %739 = arith.mulf %735, %738 : vector<1x8xf32>
      %740 = vector.broadcast %736 : vector<1x8xf32> to vector<4x8xf32>
      %741 = arith.mulf %740, %16 : vector<4x8xf32>
      %742 = vector.broadcast %737 : vector<1x8xf32> to vector<4x8xf32>
      %743 = arith.mulf %742, %19 : vector<4x8xf32>
      %744 = arith.addf %741, %743 : vector<4x8xf32>
      %745 = vector.broadcast %739 : vector<1x8xf32> to vector<4x8xf32>
      %746 = arith.mulf %745, %22 : vector<4x8xf32>
      %747 = arith.addf %744, %746 : vector<4x8xf32>
      %cst_135 = arith.constant dense<0xFF800000> : vector<8xf32>
      %748 = vector.multi_reduction <maximumf>, %747, %cst_135 [0] : vector<4x8xf32> to vector<8xf32>
      %749 = vector.shape_cast %748 : vector<8xf32> to vector<1x8xf32>
      %750 = vector.broadcast %749 : vector<1x8xf32> to vector<4x8xf32>
      %751 = arith.subf %747, %750 : vector<4x8xf32>
      %752 = math.exp %751 : vector<4x8xf32>
      %cst_136 = arith.constant dense<0.000000e+00> : vector<8xf32>
      %753 = vector.multi_reduction <add>, %752, %cst_136 [0] : vector<4x8xf32> to vector<8xf32>
      %754 = vector.shape_cast %753 : vector<8xf32> to vector<1x8xf32>
      %755 = arith.mulf %752, %16 : vector<4x8xf32>
      %cst_137 = arith.constant dense<0.000000e+00> : vector<8xf32>
      %756 = vector.multi_reduction <add>, %755, %cst_137 [0] : vector<4x8xf32> to vector<8xf32>
      %757 = vector.shape_cast %756 : vector<8xf32> to vector<1x8xf32>
      %758 = arith.mulf %752, %19 : vector<4x8xf32>
      %cst_138 = arith.constant dense<0.000000e+00> : vector<8xf32>
      %759 = vector.multi_reduction <add>, %758, %cst_138 [0] : vector<4x8xf32> to vector<8xf32>
      %760 = vector.shape_cast %759 : vector<8xf32> to vector<1x8xf32>
      %761 = arith.mulf %752, %22 : vector<4x8xf32>
      %cst_139 = arith.constant dense<0.000000e+00> : vector<8xf32>
      %762 = vector.multi_reduction <add>, %761, %cst_139 [0] : vector<4x8xf32> to vector<8xf32>
      %763 = vector.shape_cast %762 : vector<8xf32> to vector<1x8xf32>
      %764 = tpu.reciprocal %754 {approx = true} : vector<1x8xf32> -> vector<1x8xf32>
      %765 = arith.mulf %754, %764 : vector<1x8xf32>
      %cst_140 = arith.constant 2.000000e+00 : f32
      %766 = vector.broadcast %cst_140 : f32 to vector<1x8xf32>
      %767 = arith.subf %766, %765 : vector<1x8xf32>
      %768 = arith.mulf %764, %767 : vector<1x8xf32>
      %769 = vector.broadcast %cst_17 : f32 to vector<1x8xf32>
      %770 = arith.mulf %768, %769 : vector<1x8xf32>
      %771 = arith.mulf %757, %770 : vector<1x8xf32>
      %772 = arith.subf %736, %771 : vector<1x8xf32>
      %773 = arith.mulf %760, %770 : vector<1x8xf32>
      %774 = arith.subf %737, %773 : vector<1x8xf32>
      %775 = arith.mulf %763, %770 : vector<1x8xf32>
      %776 = arith.subf %739, %775 : vector<1x8xf32>
      %cst_141 = arith.constant 2.000000e+00 : f32
      %777 = vector.broadcast %cst_141 : f32 to vector<1x8xf32>
      %778 = arith.mulf %777, %729 : vector<1x8xf32>
      %779 = arith.mulf %778, %772 : vector<1x8xf32>
      %cst_142 = arith.constant 2.000000e+00 : f32
      %780 = vector.broadcast %cst_142 : f32 to vector<1x8xf32>
      %781 = arith.mulf %780, %729 : vector<1x8xf32>
      %782 = arith.mulf %781, %734 : vector<1x8xf32>
      %783 = arith.mulf %782, %774 : vector<1x8xf32>
      %784 = arith.addf %779, %783 : vector<1x8xf32>
      %cst_143 = arith.constant 3.000000e+00 : f32
      %785 = vector.broadcast %cst_143 : f32 to vector<1x8xf32>
      %786 = arith.mulf %785, %733 : vector<1x8xf32>
      %787 = arith.subf %786, %734 : vector<1x8xf32>
      %788 = arith.mulf %732, %787 : vector<1x8xf32>
      %789 = arith.mulf %788, %776 : vector<1x8xf32>
      %790 = arith.addf %784, %789 : vector<1x8xf32>
      %cst_144 = arith.constant 2.000000e+00 : f32
      %791 = vector.broadcast %cst_144 : f32 to vector<1x8xf32>
      %792 = arith.mulf %791, %732 : vector<1x8xf32>
      %793 = arith.mulf %792, %772 : vector<1x8xf32>
      %cst_145 = arith.constant 2.000000e+00 : f32
      %794 = vector.broadcast %cst_145 : f32 to vector<1x8xf32>
      %795 = arith.mulf %794, %733 : vector<1x8xf32>
      %796 = arith.mulf %795, %732 : vector<1x8xf32>
      %797 = arith.mulf %796, %774 : vector<1x8xf32>
      %798 = arith.addf %793, %797 : vector<1x8xf32>
      %cst_146 = arith.constant 3.000000e+00 : f32
      %799 = vector.broadcast %cst_146 : f32 to vector<1x8xf32>
      %800 = arith.mulf %799, %734 : vector<1x8xf32>
      %801 = arith.subf %733, %800 : vector<1x8xf32>
      %802 = arith.mulf %729, %801 : vector<1x8xf32>
      %803 = arith.mulf %802, %776 : vector<1x8xf32>
      %804 = arith.addf %798, %803 : vector<1x8xf32>
      %805 = arith.mulf %7, %790 : vector<1x8xf32>
      %806 = arith.mulf %13, %804 : vector<1x8xf32>
      %807 = math.absf %805 : vector<1x8xf32>
      %808 = math.absf %806 : vector<1x8xf32>
      %809 = arith.maximumf %807, %808 : vector<1x8xf32>
      %cst_147 = arith.constant dense<0xFF800000> : vector<1xf32>
      %810 = vector.multi_reduction <maximumf>, %809, %cst_147 [1] : vector<1x8xf32> to vector<1xf32>
      %811 = vector.shape_cast %810 : vector<1xf32> to vector<1x1xf32>
      %cst_148 = arith.constant 9.99999997E-7 : f32
      %812 = vector.broadcast %cst_148 : f32 to vector<1x1xf32>
      %813 = arith.cmpf olt, %811, %812 : vector<1x1xf32>
      %814 = arith.extui %813 : vector<1x1xi1> to vector<1x1xi32>
      %815 = arith.sitofp %814 : vector<1x1xi32> to vector<1x1xf32>
      %816 = vector.shape_cast %722 : vector<1x1xf32> to vector<1x1xf32>
      %817 = vector.broadcast %816 : vector<1x1xf32> to vector<1x8xf32>
      %cst_149 = arith.constant 5.000000e-01 : f32
      %818 = vector.broadcast %cst_149 : f32 to vector<1x8xf32>
      %819 = arith.cmpf ogt, %817, %818 : vector<1x8xf32>
      %820 = arith.select %819, %720, %729 : vector<1x8xi1>, vector<1x8xf32>
      %821 = arith.select %819, %721, %732 : vector<1x8xi1>, vector<1x8xf32>
      %822 = arith.maximumf %722, %815 : vector<1x1xf32>
      %823 = arith.addi %arg6, %c7_i32 : i32
      %c1000_i32_150 = arith.constant 1000 : i32
      %824 = arith.cmpi slt, %823, %c1000_i32_150 : i32
      %825 = arith.extui %824 : i1 to i32
      %826 = arith.sitofp %825 : i32 to f32
      %827 = vector.broadcast %826 : f32 to vector<1x8xf32>
      %828 = arith.mulf %827, %805 : vector<1x8xf32>
      %829 = arith.subf %729, %828 : vector<1x8xf32>
      %830 = vector.broadcast %826 : f32 to vector<1x8xf32>
      %831 = arith.mulf %830, %806 : vector<1x8xf32>
      %832 = arith.subf %732, %831 : vector<1x8xf32>
      %c8_i32 = arith.constant 8 : i32
      %c8_i32_151 = arith.constant 8 : i32
      %833 = arith.addi %arg6, %c8_i32_151 : i32
      scf.yield %833, %829, %832, %820, %821, %822 : i32, vector<1x8xf32>, vector<1x8xf32>, vector<1x8xf32>, vector<1x8xf32>, vector<1x1xf32>
    }
    %25 = vector.shape_cast %24#5 : vector<1x1xf32> to vector<1x1xf32>
    %26 = vector.broadcast %25 : vector<1x1xf32> to vector<1x8xf32>
    %cst_18 = arith.constant 5.000000e-01 : f32
    %27 = vector.broadcast %cst_18 : f32 to vector<1x8xf32>
    %28 = arith.cmpf ogt, %26, %27 : vector<1x8xf32>
    %29 = arith.select %28, %24#3, %24#1 : vector<1x8xi1>, vector<1x8xf32>
    %c0_19 = arith.constant 0 : index
    %c0_20 = arith.constant 0 : index
    %30 = vector.load %arg5[%c0_19, %c0_20] : memref<2x8xf32, #tpu.memory_space<vmem>>, vector<1x8xf32>
    tpu.vector_store %arg5[%c0_19, %c0_20], %29 {strides = array<i32>} : memref<2x8xf32, #tpu.memory_space<vmem>>, vector<1x8xf32>,
    %31 = arith.select %28, %24#4, %24#2 : vector<1x8xi1>, vector<1x8xf32>
    %c1_21 = arith.constant 1 : index
    %c0_22 = arith.constant 0 : index
    %32 = vector.load %arg5[%c1_21, %c0_22] : memref<2x8xf32, #tpu.memory_space<vmem>>, vector<1x8xf32>
    tpu.vector_store %arg5[%c1_21, %c0_22], %31 {strides = array<i32>} : memref<2x8xf32, #tpu.memory_space<vmem>>, vector<1x8xf32>,
    return
  }
  func.func @transform_0(%arg0: i32) -> (i32, i32) {
    %c0_i32 = arith.constant 0 : i32
    %c0_i32_0 = arith.constant 0 : i32
    return %c0_i32, %arg0 : i32, i32
  }
  func.func @transform_1(%arg0: i32) -> (i32, i32) {
    %c0_i32 = arith.constant 0 : i32
    %c0_i32_0 = arith.constant 0 : i32
    %c0_i32_1 = arith.constant 0 : i32
    return %c0_i32, %c0_i32_0 : i32, i32
  }
  func.func @transform_2(%arg0: i32) -> (i32, i32) {
    %c0_i32 = arith.constant 0 : i32
    %c0_i32_0 = arith.constant 0 : i32
    %c0_i32_1 = arith.constant 0 : i32
    return %c0_i32, %c0_i32_0 : i32, i32
  }
  func.func @transform_3(%arg0: i32) -> (i32, i32) {
    %c0_i32 = arith.constant 0 : i32
    %c0_i32_0 = arith.constant 0 : i32
    return %c0_i32, %arg0 : i32, i32
  }
  func.func @transform_4(%arg0: i32) -> (i32, i32) {
    %c0_i32 = arith.constant 0 : i32
    %c0_i32_0 = arith.constant 0 : i32
    return %c0_i32, %arg0 : i32, i32
  }
}

</mosaic_0001>

<llo_original>
// kernel: tpu_custom_call.1
$region0: #{tpu_custom_call.1}
  #allocation0 [shape = 'u32[]', space=smem, size = 0x4, offset = 0x4, fixed_abs, tag = 'smem constant byte address 0x4 - core index']
  #allocation1 [shape = 'u32[144,128]{1,0:T(1,128)}', space=vmem, size = 0x12000, scoped, tag = 'internal scratch']
  %s0 = inlined_call_operand.vmem [shape: f32[2,8], index: 0, kind: input, shape index: {}]
  %s1 = inlined_call_operand.vmem [shape: f32[4,4], index: 1, kind: input, shape index: {}]
  %s2 = inlined_call_operand.vmem [shape: f32[8,4], index: 2, kind: input, shape index: {}]
  %s3 = inlined_call_operand.vmem [shape: f32[2,8], index: 3, kind: input, shape index: {}]
  %s4 = inlined_call_operand.hbm [shape: f32[2,8], index: 4, kind: output, shape index: {}]
  %s5 = sld [smem:[#allocation0]]
  $region33: #{tpu_custom_call.1} parent=0
    _
  %s7 = ssub.s32 1, %s5
  %s8 = scalar_select 0, %s7, %s5
  $region1: #{tpu_custom_call.1} parent=0
    #allocation2 [shape = 'u8[1024]{0}', space=vmem, size = 0x400, scoped, tag = 'output window, operand 0, single buffered']
    #allocation3 [shape = 's32[1]{0}', space=sflag, size = 0x4, scoped, tag = 'scoped memory for tpu_custom_call.1']
    %9 = vsyncpa [#allocation3], 0
    // Predicated region
    $region2: #{tpu_custom_call.1} parent=1 // pred_check
      _
    $region3: #{tpu_custom_call.1} parent=1 // pred_check_branch
      %11 = sbr.rel (0) target = $region5
    $region4: #{tpu_custom_call.1} parent=1 // pred_region
      _
    $region5: #{tpu_custom_call.1} parent=1 // pred_fallthru
      _
    // Predicated region
    $region6: #{tpu_custom_call.1} parent=1 // pred_check
      _
    $region7: #{tpu_custom_call.1} parent=1 // pred_check_branch
      %13 = sbr.rel (0) target = $region9
    $region8: #{tpu_custom_call.1} parent=1 // pred_region
      _
    $region9: #{tpu_custom_call.1} parent=1 // pred_fallthru
      _
    // Predicated region
    $region10: #{tpu_custom_call.1} parent=1 // pred_check
      _
    $region11: #{tpu_custom_call.1} parent=1 // pred_check_branch
      %15 = sbr.rel (0) target = $region13
    $region12: #{tpu_custom_call.1} parent=1 // pred_region
      _
    $region13: #{tpu_custom_call.1} parent=1 // pred_fallthru
      _
    // Predicated region
    $region14: #{tpu_custom_call.1} parent=1 // pred_check
      _
    $region15: #{tpu_custom_call.1} parent=1 // pred_check_branch
      %17 = sbr.rel (0) target = $region17
    $region16: #{tpu_custom_call.1} parent=1 // pred_region
      _
    $region17: #{tpu_custom_call.1} parent=1 // pred_fallthru
      _
    %v18 = vld [vmem:[%s0] sm:$0x1]
    %v19 = vld [vmem:[%s0 + $0x1] sm:$0x1]
    %v20 = vld [vmem:[%s3] sm:$0x1]
    %vm21 = vcmp.gt.f32.partialorder %v20, 0.5
    %v22 = vsel %vm21, 0.01, 0.0
    %v23 = vld [vmem:[%s3 + $0x1] sm:$0x1]
    %vm24 = vcmp.gt.f32.partialorder %v23, 0.5
    %v25 = vsel %vm24, 0.01, 0.0
    %v26 = vld [vmem:[%s1] sm:$0xf]
    %28 = vset.pattern.permute.xlu0 0
    %29 = vperm.xlu0 %28, %v26
    %v30 = vpop.permute.xlu0 %29
    %32 = vset.pattern.permute.xlu0 1
    %33 = vperm.xlu0 %32, %v26
    %v34 = vpop.permute.xlu0 %33
    %36 = vset.pattern.permute.xlu0 2
    %37 = vperm.xlu0 %36, %v26
    %v38 = vpop.permute.xlu0 %37
    // While loop
    $region18: #{tpu_custom_call.1} parent=1 // loop_pre_header
      _
    $region19: #{tpu_custom_call.1} parent=1 // loop_header
      %s41 = sphi 0, %s1023
      %v42 = vphi %v18, %v1020
      %v43 = vphi %v19, %v1022
      %v44 = vphi %v18, %v1011
      %v45 = vphi %v19, %v1012
      %v46 = vphi 0.0, %v1013
      %p47 = scmp.lt.s32.totalorder %s41, 1000
      %s48 = vtos %v46
      %p49 = scmp.lt.f32.partialorder %s48, 0.5
      %p50 = pnand %p47, %p49
      %p51 = pneg %p50
    $region20: #{tpu_custom_call.1} parent=1 // loop_header_branch
      %53 = sbr.rel (%p50) target = $region24
    $region21: #{tpu_custom_call.1} parent=1 // loop_body
      %v54 = vmul.f32 %v42, %v42
      %v55 = vmul.f32 %v43, %v43
      %v56 = vmul.f32 %v42, %v43
      %v57 = vadd.f32 %v54, %v55
      %v58 = vmul.f32 %v54, %v55
      %v59 = vsub.f32 %v54, %v55
      %v60 = vmul.f32 %v56, %v59
      %v61 = vlaneseq
      %v62 = vshrl.u32 %v61, 7
      %v63 = vsub.s32 0, %v62
      %v64 = vrot.slane %v57, %v63
      %v65 = vmul.f32 %v64, %v30
      %v66 = vlaneseq
      %v67 = vshrl.u32 %v66, 7
      %v68 = vsub.s32 0, %v67
      %v69 = vrot.slane %v58, %v68
      %v70 = vmul.f32 %v69, %v34
      %v71 = vadd.f32 %v65, %v70
      %v72 = vlaneseq
      %v73 = vshrl.u32 %v72, 7
      %v74 = vsub.s32 0, %v73
      %v75 = vrot.slane %v60, %v74
      %v76 = vmul.f32 %v75, %v38
      %v77 = vadd.f32 %v71, %v76
      %vm78 = vcmask 60416
      %v79 = vsel %vm78, %v77, -inf
      %v80 = vrot.slane %v79, 4
      %v81 = vmax.f32 %v79, %v80
      %v82 = vrot.slane %v81, 2
      %v83 = vmax.f32 %v81, %v82
      %v84 = vrot.slane %v83, 1
      %v85 = vmax.f32 %v83, %v84
      %v86 = vsub.f32 %v77, %v85
      %v87 = vmul.f32 %v86, 1.442695
      %v88 = vpow.pop %v87
      %v89 = vsel %vm78, %v88, 0.0
      %v90 = vrot.slane %v89, 4
      %v91 = vadd.f32 %v89, %v90
      %v92 = vrot.slane %v91, 2
      %v93 = vadd.f32 %v91, %v92
      %v94 = vrot.slane %v93, 1
      %v95 = vadd.f32 %v93, %v94
      %v96 = vmul.f32 %v88, %v30
      %v97 = vsel %vm78, %v96, 0.0
      %v98 = vrot.slane %v97, 4
      %v99 = vadd.f32 %v97, %v98
      %v100 = vrot.slane %v99, 2
      %v101 = vadd.f32 %v99, %v100
      %v102 = vrot.slane %v101, 1
      %v103 = vadd.f32 %v101, %v102
      %v104 = vmul.f32 %v88, %v34
      %v105 = vsel %vm78, %v104, 0.0
      %v106 = vrot.slane %v105, 4
      %v107 = vadd.f32 %v105, %v106
      %v108 = vrot.slane %v107, 2
      %v109 = vadd.f32 %v107, %v108
      %v110 = vrot.slane %v109, 1
      %v111 = vadd.f32 %v109, %v110
      %v112 = vmul.f32 %v88, %v38
      %v113 = vsel %vm78, %v112, 0.0
      %v114 = vrot.slane %v113, 4
      %v115 = vadd.f32 %v113, %v114
      %v116 = vrot.slane %v115, 2
      %v117 = vadd.f32 %v115, %v116
      %v118 = vrot.slane %v117, 1
      %v119 = vadd.f32 %v117, %v118
      %v120 = vrcp.pop %v95
      %v121 = vmul.f32 %v95, %v120
      %v122 = vsub.f32 2.0, %v121
      %v123 = vmul.f32 %v120, %v122
      %v124 = vmul.f32 %v123, 100.0
      %v125 = vmul.f32 %v103, %v124
      %v126 = vsub.f32 %v57, %v125
      %v127 = vmul.f32 %v111, %v124
      %v128 = vsub.f32 %v58, %v127
      %v129 = vmul.f32 %v119, %v124
      %v130 = vsub.f32 %v60, %v129
      %v131 = vmul.f32 %v42, 2.0
      %v132 = vmul.f32 %v131, %v126
      %v133 = vmul.f32 %v131, %v55
      %v134 = vmul.f32 %v133, %v128
      %v135 = vadd.f32 %v132, %v134
      %v136 = vmul.f32 %v54, 3.0
      %v137 = vsub.f32 %v136, %v55
      %v138 = vmul.f32 %v43, %v137
      %v139 = vmul.f32 %v138, %v130
      %v140 = vadd.f32 %v135, %v139
      %v141 = vmul.f32 %v43, 2.0
      %v142 = vmul.f32 %v141, %v126
      %v143 = vmul.f32 %v54, 2.0
      %v144 = vmul.f32 %v143, %v43
      %v145 = vmul.f32 %v144, %v128
      %v146 = vadd.f32 %v142, %v145
      %v147 = vmul.f32 %v55, 3.0
      %v148 = vsub.f32 %v54, %v147
      %v149 = vmul.f32 %v42, %v148
      %v150 = vmul.f32 %v149, %v130
      %v151 = vadd.f32 %v146, %v150
      %v152 = vmul.f32 %v22, %v140
      %v153 = vmul.f32 %v25, %v151
      %v154 = vand.u32 2147483647, %v152
      %v155 = vand.u32 2147483647, %v153
      %v156 = vmax.f32 %v154, %v155
      %vm157 = vcmask 57344
      %v158 = vsel %vm157, %v156, -inf
      %159 = vmax.xlane.f32.xlu0 %v158
      %v160 = vpop.xlane.xlu0 %159
      %vm161 = vcmp.lt.f32.partialorder %v160, 1e-06
      %v162 = vsel %vm161, 1, 0
      %v163 = vcvt.s32.f32 %v162
      %vm164 = vcmp.gt.f32.partialorder %v46, 0.5
      %v165 = vsel %vm164, %v44, %v42
      %v166 = vsel %vm164, %v45, %v43
      %v167 = vmax.f32 %v46, %v163
      %p168 = scmp.lt.s32.totalorder %s41, 1000
      %s169 = scalar_select %p168, 1, 0
      %s170 = scvt.s32.f32 %s169
      %v171 = vstv %s170
      %v172 = vmul.f32 %v171, %v152
      %v173 = vsub.f32 %v42, %v172
      %v174 = vmul.f32 %v171, %v153
      %v175 = vsub.f32 %v43, %v174
      %v176 = vmul.f32 %v173, %v173
      %v177 = vmul.f32 %v175, %v175
      %v178 = vmul.f32 %v173, %v175
      %v179 = vadd.f32 %v176, %v177
      %v180 = vmul.f32 %v176, %v177
      %v181 = vsub.f32 %v176, %v177
      %v182 = vmul.f32 %v178, %v181
      %v183 = vlaneseq
      %v184 = vshrl.u32 %v183, 7
      %v185 = vsub.s32 0, %v184
      %v186 = vrot.slane %v179, %v185
      %v187 = vmul.f32 %v186, %v30
      %v188 = vlaneseq
      %v189 = vshrl.u32 %v188, 7
      %v190 = vsub.s32 0, %v189
      %v191 = vrot.slane %v180, %v190
      %v192 = vmul.f32 %v191, %v34
      %v193 = vadd.f32 %v187, %v192
      %v194 = vlaneseq
      %v195 = vshrl.u32 %v194, 7
      %v196 = vsub.s32 0, %v195
      %v197 = vrot.slane %v182, %v196
      %v198 = vmul.f32 %v197, %v38
      %v199 = vadd.f32 %v193, %v198
      %v200 = vsel %vm78, %v199, -inf
      %v201 = vrot.slane %v200, 4
      %v202 = vmax.f32 %v200, %v201
      %v203 = vrot.slane %v202, 2
      %v204 = vmax.f32 %v202, %v203
      %v205 = vrot.slane %v204, 1
      %v206 = vmax.f32 %v204, %v205
      %v207 = vsub.f32 %v199, %v206
      %v208 = vmul.f32 %v207, 1.442695
      %v209 = vpow.pop %v208
      %v210 = vsel %vm78, %v209, 0.0
      %v211 = vrot.slane %v210, 4
      %v212 = vadd.f32 %v210, %v211
      %v213 = vrot.slane %v212, 2
      %v214 = vadd.f32 %v212, %v213
      %v215 = vrot.slane %v214, 1
      %v216 = vadd.f32 %v214, %v215
      %v217 = vmul.f32 %v209, %v30
      %v218 = vsel %vm78, %v217, 0.0
      %v219 = vrot.slane %v218, 4
      %v220 = vadd.f32 %v218, %v219
      %v221 = vrot.slane %v220, 2
      %v222 = vadd.f32 %v220, %v221
      %v223 = vrot.slane %v222, 1
      %v224 = vadd.f32 %v222, %v223
      %v225 = vmul.f32 %v209, %v34
      %v226 = vsel %vm78, %v225, 0.0
      %v227 = vrot.slane %v226, 4
      %v228 = vadd.f32 %v226, %v227
      %v229 = vrot.slane %v228, 2
      %v230 = vadd.f32 %v228, %v229
      %v231 = vrot.slane %v230, 1
      %v232 = vadd.f32 %v230, %v231
      %v233 = vmul.f32 %v209, %v38
      %v234 = vsel %vm78, %v233, 0.0
      %v235 = vrot.slane %v234, 4
      %v236 = vadd.f32 %v234, %v235
      %v237 = vrot.slane %v236, 2
      %v238 = vadd.f32 %v236, %v237
      %v239 = vrot.slane %v238, 1
      %v240 = vadd.f32 %v238, %v239
      %v241 = vrcp.pop %v216
      %v242 = vmul.f32 %v216, %v241
      %v243 = vsub.f32 2.0, %v242
      %v244 = vmul.f32 %v241, %v243
      %v245 = vmul.f32 %v244, 100.0
      %v246 = vmul.f32 %v224, %v245
      %v247 = vsub.f32 %v179, %v246
      %v248 = vmul.f32 %v232, %v245
      %v249 = vsub.f32 %v180, %v248
      %v250 = vmul.f32 %v240, %v245
      %v251 = vsub.f32 %v182, %v250
      %v252 = vmul.f32 %v173, 2.0
      %v253 = vmul.f32 %v252, %v247
      %v254 = vmul.f32 %v252, %v177
      %v255 = vmul.f32 %v254, %v249
      %v256 = vadd.f32 %v253, %v255
      %v257 = vmul.f32 %v176, 3.0
      %v258 = vsub.f32 %v257, %v177
      %v259 = vmul.f32 %v175, %v258
      %v260 = vmul.f32 %v259, %v251
      %v261 = vadd.f32 %v256, %v260
      %v262 = vmul.f32 %v175, 2.0
      %v263 = vmul.f32 %v262, %v247
      %v264 = vmul.f32 %v176, 2.0
      %v265 = vmul.f32 %v264, %v175
      %v266 = vmul.f32 %v265, %v249
      %v267 = vadd.f32 %v263, %v266
      %v268 = vmul.f32 %v177, 3.0
      %v269 = vsub.f32 %v176, %v268
      %v270 = vmul.f32 %v173, %v269
      %v271 = vmul.f32 %v270, %v251
      %v272 = vadd.f32 %v267, %v271
      %v273 = vmul.f32 %v22, %v261
      %v274 = vmul.f32 %v25, %v272
      %v275 = vand.u32 2147483647, %v273
      %v276 = vand.u32 2147483647, %v274
      %v277 = vmax.f32 %v275, %v276
      %v278 = vsel %vm157, %v277, -inf
      %279 = vmax.xlane.f32.xlu0 %v278
      %v280 = vpop.xlane.xlu0 %279
      %vm281 = vcmp.lt.f32.partialorder %v280, 1e-06
      %v282 = vsel %vm281, 1, 0
      %v283 = vcvt.s32.f32 %v282
      %vm284 = vcmp.gt.f32.partialorder %v167, 0.5
      %v285 = vsel %vm284, %v165, %v173
      %v286 = vsel %vm284, %v166, %v175
      %v287 = vmax.f32 %v167, %v283
      %s288 = sadd.s32 %s41, 1
      %p289 = scmp.lt.s32.totalorder %s288, 1000
      %s290 = scalar_select %p289, 1, 0
      %s291 = scvt.s32.f32 %s290
      %v292 = vstv %s291
      %v293 = vmul.f32 %v292, %v273
      %v294 = vsub.f32 %v173, %v293
      %v295 = vmul.f32 %v292, %v274
      %v296 = vsub.f32 %v175, %v295
      %v297 = vmul.f32 %v294, %v294
      %v298 = vmul.f32 %v296, %v296
      %v299 = vmul.f32 %v294, %v296
      %v300 = vadd.f32 %v297, %v298
      %v301 = vmul.f32 %v297, %v298
      %v302 = vsub.f32 %v297, %v298
      %v303 = vmul.f32 %v299, %v302
      %v304 = vlaneseq
      %v305 = vshrl.u32 %v304, 7
      %v306 = vsub.s32 0, %v305
      %v307 = vrot.slane %v300, %v306
      %v308 = vmul.f32 %v307, %v30
      %v309 = vlaneseq
      %v310 = vshrl.u32 %v309, 7
      %v311 = vsub.s32 0, %v310
      %v312 = vrot.slane %v301, %v311
      %v313 = vmul.f32 %v312, %v34
      %v314 = vadd.f32 %v308, %v313
      %v315 = vlaneseq
      %v316 = vshrl.u32 %v315, 7
      %v317 = vsub.s32 0, %v316
      %v318 = vrot.slane %v303, %v317
      %v319 = vmul.f32 %v318, %v38
      %v320 = vadd.f32 %v314, %v319
      %v321 = vsel %vm78, %v320, -inf
      %v322 = vrot.slane %v321, 4
      %v323 = vmax.f32 %v321, %v322
      %v324 = vrot.slane %v323, 2
      %v325 = vmax.f32 %v323, %v324
      %v326 = vrot.slane %v325, 1
      %v327 = vmax.f32 %v325, %v326
      %v328 = vsub.f32 %v320, %v327
      %v329 = vmul.f32 %v328, 1.442695
      %v330 = vpow.pop %v329
      %v331 = vsel %vm78, %v330, 0.0
      %v332 = vrot.slane %v331, 4
      %v333 = vadd.f32 %v331, %v332
      %v334 = vrot.slane %v333, 2
      %v335 = vadd.f32 %v333, %v334
      %v336 = vrot.slane %v335, 1
      %v337 = vadd.f32 %v335, %v336
      %v338 = vmul.f32 %v330, %v30
      %v339 = vsel %vm78, %v338, 0.0
      %v340 = vrot.slane %v339, 4
      %v341 = vadd.f32 %v339, %v340
      %v342 = vrot.slane %v341, 2
      %v343 = vadd.f32 %v341, %v342
      %v344 = vrot.slane %v343, 1
      %v345 = vadd.f32 %v343, %v344
      %v346 = vmul.f32 %v330, %v34
      %v347 = vsel %vm78, %v346, 0.0
      %v348 = vrot.slane %v347, 4
      %v349 = vadd.f32 %v347, %v348
      %v350 = vrot.slane %v349, 2
      %v351 = vadd.f32 %v349, %v350
      %v352 = vrot.slane %v351, 1
      %v353 = vadd.f32 %v351, %v352
      %v354 = vmul.f32 %v330, %v38
      %v355 = vsel %vm78, %v354, 0.0
      %v356 = vrot.slane %v355, 4
      %v357 = vadd.f32 %v355, %v356
      %v358 = vrot.slane %v357, 2
      %v359 = vadd.f32 %v357, %v358
      %v360 = vrot.slane %v359, 1
      %v361 = vadd.f32 %v359, %v360
      %v362 = vrcp.pop %v337
      %v363 = vmul.f32 %v337, %v362
      %v364 = vsub.f32 2.0, %v363
      %v365 = vmul.f32 %v362, %v364
      %v366 = vmul.f32 %v365, 100.0
      %v367 = vmul.f32 %v345, %v366
      %v368 = vsub.f32 %v300, %v367
      %v369 = vmul.f32 %v353, %v366
      %v370 = vsub.f32 %v301, %v369
      %v371 = vmul.f32 %v361, %v366
      %v372 = vsub.f32 %v303, %v371
      %v373 = vmul.f32 %v294, 2.0
      %v374 = vmul.f32 %v373, %v368
      %v375 = vmul.f32 %v373, %v298
      %v376 = vmul.f32 %v375, %v370
      %v377 = vadd.f32 %v374, %v376
      %v378 = vmul.f32 %v297, 3.0
      %v379 = vsub.f32 %v378, %v298
      %v380 = vmul.f32 %v296, %v379
      %v381 = vmul.f32 %v380, %v372
      %v382 = vadd.f32 %v377, %v381
      %v383 = vmul.f32 %v296, 2.0
      %v384 = vmul.f32 %v383, %v368
      %v385 = vmul.f32 %v297, 2.0
      %v386 = vmul.f32 %v385, %v296
      %v387 = vmul.f32 %v386, %v370
      %v388 = vadd.f32 %v384, %v387
      %v389 = vmul.f32 %v298, 3.0
      %v390 = vsub.f32 %v297, %v389
      %v391 = vmul.f32 %v294, %v390
      %v392 = vmul.f32 %v391, %v372
      %v393 = vadd.f32 %v388, %v392
      %v394 = vmul.f32 %v22, %v382
      %v395 = vmul.f32 %v25, %v393
      %v396 = vand.u32 2147483647, %v394
      %v397 = vand.u32 2147483647, %v395
      %v398 = vmax.f32 %v396, %v397
      %v399 = vsel %vm157, %v398, -inf
      %400 = vmax.xlane.f32.xlu0 %v399
      %v401 = vpop.xlane.xlu0 %400
      %vm402 = vcmp.lt.f32.partialorder %v401, 1e-06
      %v403 = vsel %vm402, 1, 0
      %v404 = vcvt.s32.f32 %v403
      %vm405 = vcmp.gt.f32.partialorder %v287, 0.5
      %v406 = vsel %vm405, %v285, %v294
      %v407 = vsel %vm405, %v286, %v296
      %v408 = vmax.f32 %v287, %v404
      %s409 = sadd.s32 %s41, 2
      %p410 = scmp.lt.s32.totalorder %s409, 1000
      %s411 = scalar_select %p410, 1, 0
      %s412 = scvt.s32.f32 %s411
      %v413 = vstv %s412
      %v414 = vmul.f32 %v413, %v394
      %v415 = vsub.f32 %v294, %v414
      %v416 = vmul.f32 %v413, %v395
      %v417 = vsub.f32 %v296, %v416
      %v418 = vmul.f32 %v415, %v415
      %v419 = vmul.f32 %v417, %v417
      %v420 = vmul.f32 %v415, %v417
      %v421 = vadd.f32 %v418, %v419
      %v422 = vmul.f32 %v418, %v419
      %v423 = vsub.f32 %v418, %v419
      %v424 = vmul.f32 %v420, %v423
      %v425 = vlaneseq
      %v426 = vshrl.u32 %v425, 7
      %v427 = vsub.s32 0, %v426
      %v428 = vrot.slane %v421, %v427
      %v429 = vmul.f32 %v428, %v30
      %v430 = vlaneseq
      %v431 = vshrl.u32 %v430, 7
      %v432 = vsub.s32 0, %v431
      %v433 = vrot.slane %v422, %v432
      %v434 = vmul.f32 %v433, %v34
      %v435 = vadd.f32 %v429, %v434
      %v436 = vlaneseq
      %v437 = vshrl.u32 %v436, 7
      %v438 = vsub.s32 0, %v437
      %v439 = vrot.slane %v424, %v438
      %v440 = vmul.f32 %v439, %v38
      %v441 = vadd.f32 %v435, %v440
      %v442 = vsel %vm78, %v441, -inf
      %v443 = vrot.slane %v442, 4
      %v444 = vmax.f32 %v442, %v443
      %v445 = vrot.slane %v444, 2
      %v446 = vmax.f32 %v444, %v445
      %v447 = vrot.slane %v446, 1
      %v448 = vmax.f32 %v446, %v447
      %v449 = vsub.f32 %v441, %v448
      %v450 = vmul.f32 %v449, 1.442695
      %v451 = vpow.pop %v450
      %v452 = vsel %vm78, %v451, 0.0
      %v453 = vrot.slane %v452, 4
      %v454 = vadd.f32 %v452, %v453
      %v455 = vrot.slane %v454, 2
      %v456 = vadd.f32 %v454, %v455
      %v457 = vrot.slane %v456, 1
      %v458 = vadd.f32 %v456, %v457
      %v459 = vmul.f32 %v451, %v30
      %v460 = vsel %vm78, %v459, 0.0
      %v461 = vrot.slane %v460, 4
      %v462 = vadd.f32 %v460, %v461
      %v463 = vrot.slane %v462, 2
      %v464 = vadd.f32 %v462, %v463
      %v465 = vrot.slane %v464, 1
      %v466 = vadd.f32 %v464, %v465
      %v467 = vmul.f32 %v451, %v34
      %v468 = vsel %vm78, %v467, 0.0
      %v469 = vrot.slane %v468, 4
      %v470 = vadd.f32 %v468, %v469
      %v471 = vrot.slane %v470, 2
      %v472 = vadd.f32 %v470, %v471
      %v473 = vrot.slane %v472, 1
      %v474 = vadd.f32 %v472, %v473
      %v475 = vmul.f32 %v451, %v38
      %v476 = vsel %vm78, %v475, 0.0
      %v477 = vrot.slane %v476, 4
      %v478 = vadd.f32 %v476, %v477
      %v479 = vrot.slane %v478, 2
      %v480 = vadd.f32 %v478, %v479
      %v481 = vrot.slane %v480, 1
      %v482 = vadd.f32 %v480, %v481
      %v483 = vrcp.pop %v458
      %v484 = vmul.f32 %v458, %v483
      %v485 = vsub.f32 2.0, %v484
      %v486 = vmul.f32 %v483, %v485
      %v487 = vmul.f32 %v486, 100.0
      %v488 = vmul.f32 %v466, %v487
      %v489 = vsub.f32 %v421, %v488
      %v490 = vmul.f32 %v474, %v487
      %v491 = vsub.f32 %v422, %v490
      %v492 = vmul.f32 %v482, %v487
      %v493 = vsub.f32 %v424, %v492
      %v494 = vmul.f32 %v415, 2.0
      %v495 = vmul.f32 %v494, %v489
      %v496 = vmul.f32 %v494, %v419
      %v497 = vmul.f32 %v496, %v491
      %v498 = vadd.f32 %v495, %v497
      %v499 = vmul.f32 %v418, 3.0
      %v500 = vsub.f32 %v499, %v419
      %v501 = vmul.f32 %v417, %v500
      %v502 = vmul.f32 %v501, %v493
      %v503 = vadd.f32 %v498, %v502
      %v504 = vmul.f32 %v417, 2.0
      %v505 = vmul.f32 %v504, %v489
      %v506 = vmul.f32 %v418, 2.0
      %v507 = vmul.f32 %v506, %v417
      %v508 = vmul.f32 %v507, %v491
      %v509 = vadd.f32 %v505, %v508
      %v510 = vmul.f32 %v419, 3.0
      %v511 = vsub.f32 %v418, %v510
      %v512 = vmul.f32 %v415, %v511
      %v513 = vmul.f32 %v512, %v493
      %v514 = vadd.f32 %v509, %v513
      %v515 = vmul.f32 %v22, %v503
      %v516 = vmul.f32 %v25, %v514
      %v517 = vand.u32 2147483647, %v515
      %v518 = vand.u32 2147483647, %v516
      %v519 = vmax.f32 %v517, %v518
      %v520 = vsel %vm157, %v519, -inf
      %521 = vmax.xlane.f32.xlu0 %v520
      %v522 = vpop.xlane.xlu0 %521
      %vm523 = vcmp.lt.f32.partialorder %v522, 1e-06
      %v524 = vsel %vm523, 1, 0
      %v525 = vcvt.s32.f32 %v524
      %vm526 = vcmp.gt.f32.partialorder %v408, 0.5
      %v527 = vsel %vm526, %v406, %v415
      %v528 = vsel %vm526, %v407, %v417
      %v529 = vmax.f32 %v408, %v525
      %s530 = sadd.s32 %s41, 3
      %p531 = scmp.lt.s32.totalorder %s530, 1000
      %s532 = scalar_select %p531, 1, 0
      %s533 = scvt.s32.f32 %s532
      %v534 = vstv %s533
      %v535 = vmul.f32 %v534, %v515
      %v536 = vsub.f32 %v415, %v535
      %v537 = vmul.f32 %v534, %v516
      %v538 = vsub.f32 %v417, %v537
      %v539 = vmul.f32 %v536, %v536
      %v540 = vmul.f32 %v538, %v538
      %v541 = vmul.f32 %v536, %v538
      %v542 = vadd.f32 %v539, %v540
      %v543 = vmul.f32 %v539, %v540
      %v544 = vsub.f32 %v539, %v540
      %v545 = vmul.f32 %v541, %v544
      %v546 = vlaneseq
      %v547 = vshrl.u32 %v546, 7
      %v548 = vsub.s32 0, %v547
      %v549 = vrot.slane %v542, %v548
      %v550 = vmul.f32 %v549, %v30
      %v551 = vlaneseq
      %v552 = vshrl.u32 %v551, 7
      %v553 = vsub.s32 0, %v552
      %v554 = vrot.slane %v543, %v553
      %v555 = vmul.f32 %v554, %v34
      %v556 = vadd.f32 %v550, %v555
      %v557 = vlaneseq
      %v558 = vshrl.u32 %v557, 7
      %v559 = vsub.s32 0, %v558
      %v560 = vrot.slane %v545, %v559
      %v561 = vmul.f32 %v560, %v38
      %v562 = vadd.f32 %v556, %v561
      %v563 = vsel %vm78, %v562, -inf
      %v564 = vrot.slane %v563, 4
      %v565 = vmax.f32 %v563, %v564
      %v566 = vrot.slane %v565, 2
      %v567 = vmax.f32 %v565, %v566
      %v568 = vrot.slane %v567, 1
      %v569 = vmax.f32 %v567, %v568
      %v570 = vsub.f32 %v562, %v569
      %v571 = vmul.f32 %v570, 1.442695
      %v572 = vpow.pop %v571
      %v573 = vsel %vm78, %v572, 0.0
      %v574 = vrot.slane %v573, 4
      %v575 = vadd.f32 %v573, %v574
      %v576 = vrot.slane %v575, 2
      %v577 = vadd.f32 %v575, %v576
      %v578 = vrot.slane %v577, 1
      %v579 = vadd.f32 %v577, %v578
      %v580 = vmul.f32 %v572, %v30
      %v581 = vsel %vm78, %v580, 0.0
      %v582 = vrot.slane %v581, 4
      %v583 = vadd.f32 %v581, %v582
      %v584 = vrot.slane %v583, 2
      %v585 = vadd.f32 %v583, %v584
      %v586 = vrot.slane %v585, 1
      %v587 = vadd.f32 %v585, %v586
      %v588 = vmul.f32 %v572, %v34
      %v589 = vsel %vm78, %v588, 0.0
      %v590 = vrot.slane %v589, 4
      %v591 = vadd.f32 %v589, %v590
      %v592 = vrot.slane %v591, 2
      %v593 = vadd.f32 %v591, %v592
      %v594 = vrot.slane %v593, 1
      %v595 = vadd.f32 %v593, %v594
      %v596 = vmul.f32 %v572, %v38
      %v597 = vsel %vm78, %v596, 0.0
      %v598 = vrot.slane %v597, 4
      %v599 = vadd.f32 %v597, %v598
      %v600 = vrot.slane %v599, 2
      %v601 = vadd.f32 %v599, %v600
      %v602 = vrot.slane %v601, 1
      %v603 = vadd.f32 %v601, %v602
      %v604 = vrcp.pop %v579
      %v605 = vmul.f32 %v579, %v604
      %v606 = vsub.f32 2.0, %v605
      %v607 = vmul.f32 %v604, %v606
      %v608 = vmul.f32 %v607, 100.0
      %v609 = vmul.f32 %v587, %v608
      %v610 = vsub.f32 %v542, %v609
      %v611 = vmul.f32 %v595, %v608
      %v612 = vsub.f32 %v543, %v611
      %v613 = vmul.f32 %v603, %v608
      %v614 = vsub.f32 %v545, %v613
      %v615 = vmul.f32 %v536, 2.0
      %v616 = vmul.f32 %v615, %v610
      %v617 = vmul.f32 %v615, %v540
      %v618 = vmul.f32 %v617, %v612
      %v619 = vadd.f32 %v616, %v618
      %v620 = vmul.f32 %v539, 3.0
      %v621 = vsub.f32 %v620, %v540
      %v622 = vmul.f32 %v538, %v621
      %v623 = vmul.f32 %v622, %v614
      %v624 = vadd.f32 %v619, %v623
      %v625 = vmul.f32 %v538, 2.0
      %v626 = vmul.f32 %v625, %v610
      %v627 = vmul.f32 %v539, 2.0
      %v628 = vmul.f32 %v627, %v538
      %v629 = vmul.f32 %v628, %v612
      %v630 = vadd.f32 %v626, %v629
      %v631 = vmul.f32 %v540, 3.0
      %v632 = vsub.f32 %v539, %v631
      %v633 = vmul.f32 %v536, %v632
      %v634 = vmul.f32 %v633, %v614
      %v635 = vadd.f32 %v630, %v634
      %v636 = vmul.f32 %v22, %v624
      %v637 = vmul.f32 %v25, %v635
      %v638 = vand.u32 2147483647, %v636
      %v639 = vand.u32 2147483647, %v637
      %v640 = vmax.f32 %v638, %v639
      %v641 = vsel %vm157, %v640, -inf
      %642 = vmax.xlane.f32.xlu0 %v641
      %v643 = vpop.xlane.xlu0 %642
      %vm644 = vcmp.lt.f32.partialorder %v643, 1e-06
      %v645 = vsel %vm644, 1, 0
      %v646 = vcvt.s32.f32 %v645
      %vm647 = vcmp.gt.f32.partialorder %v529, 0.5
      %v648 = vsel %vm647, %v527, %v536
      %v649 = vsel %vm647, %v528, %v538
      %v650 = vmax.f32 %v529, %v646
      %s651 = sadd.s32 %s41, 4
      %p652 = scmp.lt.s32.totalorder %s651, 1000
      %s653 = scalar_select %p652, 1, 0
      %s654 = scvt.s32.f32 %s653
      %v655 = vstv %s654
      %v656 = vmul.f32 %v655, %v636
      %v657 = vsub.f32 %v536, %v656
      %v658 = vmul.f32 %v655, %v637
      %v659 = vsub.f32 %v538, %v658
      %v660 = vmul.f32 %v657, %v657
      %v661 = vmul.f32 %v659, %v659
      %v662 = vmul.f32 %v657, %v659
      %v663 = vadd.f32 %v660, %v661
      %v664 = vmul.f32 %v660, %v661
      %v665 = vsub.f32 %v660, %v661
      %v666 = vmul.f32 %v662, %v665
      %v667 = vlaneseq
      %v668 = vshrl.u32 %v667, 7
      %v669 = vsub.s32 0, %v668
      %v670 = vrot.slane %v663, %v669
      %v671 = vmul.f32 %v670, %v30
      %v672 = vlaneseq
      %v673 = vshrl.u32 %v672, 7
      %v674 = vsub.s32 0, %v673
      %v675 = vrot.slane %v664, %v674
      %v676 = vmul.f32 %v675, %v34
      %v677 = vadd.f32 %v671, %v676
      %v678 = vlaneseq
      %v679 = vshrl.u32 %v678, 7
      %v680 = vsub.s32 0, %v679
      %v681 = vrot.slane %v666, %v680
      %v682 = vmul.f32 %v681, %v38
      %v683 = vadd.f32 %v677, %v682
      %v684 = vsel %vm78, %v683, -inf
      %v685 = vrot.slane %v684, 4
      %v686 = vmax.f32 %v684, %v685
      %v687 = vrot.slane %v686, 2
      %v688 = vmax.f32 %v686, %v687
      %v689 = vrot.slane %v688, 1
      %v690 = vmax.f32 %v688, %v689
      %v691 = vsub.f32 %v683, %v690
      %v692 = vmul.f32 %v691, 1.442695
      %v693 = vpow.pop %v692
      %v694 = vsel %vm78, %v693, 0.0
      %v695 = vrot.slane %v694, 4
      %v696 = vadd.f32 %v694, %v695
      %v697 = vrot.slane %v696, 2
      %v698 = vadd.f32 %v696, %v697
      %v699 = vrot.slane %v698, 1
      %v700 = vadd.f32 %v698, %v699
      %v701 = vmul.f32 %v693, %v30
      %v702 = vsel %vm78, %v701, 0.0
      %v703 = vrot.slane %v702, 4
      %v704 = vadd.f32 %v702, %v703
      %v705 = vrot.slane %v704, 2
      %v706 = vadd.f32 %v704, %v705
      %v707 = vrot.slane %v706, 1
      %v708 = vadd.f32 %v706, %v707
      %v709 = vmul.f32 %v693, %v34
      %v710 = vsel %vm78, %v709, 0.0
      %v711 = vrot.slane %v710, 4
      %v712 = vadd.f32 %v710, %v711
      %v713 = vrot.slane %v712, 2
      %v714 = vadd.f32 %v712, %v713
      %v715 = vrot.slane %v714, 1
      %v716 = vadd.f32 %v714, %v715
      %v717 = vmul.f32 %v693, %v38
      %v718 = vsel %vm78, %v717, 0.0
      %v719 = vrot.slane %v718, 4
      %v720 = vadd.f32 %v718, %v719
      %v721 = vrot.slane %v720, 2
      %v722 = vadd.f32 %v720, %v721
      %v723 = vrot.slane %v722, 1
      %v724 = vadd.f32 %v722, %v723
      %v725 = vrcp.pop %v700
      %v726 = vmul.f32 %v700, %v725
      %v727 = vsub.f32 2.0, %v726
      %v728 = vmul.f32 %v725, %v727
      %v729 = vmul.f32 %v728, 100.0
      %v730 = vmul.f32 %v708, %v729
      %v731 = vsub.f32 %v663, %v730
      %v732 = vmul.f32 %v716, %v729
      %v733 = vsub.f32 %v664, %v732
      %v734 = vmul.f32 %v724, %v729
      %v735 = vsub.f32 %v666, %v734
      %v736 = vmul.f32 %v657, 2.0
      %v737 = vmul.f32 %v736, %v731
      %v738 = vmul.f32 %v736, %v661
      %v739 = vmul.f32 %v738, %v733
      %v740 = vadd.f32 %v737, %v739
      %v741 = vmul.f32 %v660, 3.0
      %v742 = vsub.f32 %v741, %v661
      %v743 = vmul.f32 %v659, %v742
      %v744 = vmul.f32 %v743, %v735
      %v745 = vadd.f32 %v740, %v744
      %v746 = vmul.f32 %v659, 2.0
      %v747 = vmul.f32 %v746, %v731
      %v748 = vmul.f32 %v660, 2.0
      %v749 = vmul.f32 %v748, %v659
      %v750 = vmul.f32 %v749, %v733
      %v751 = vadd.f32 %v747, %v750
      %v752 = vmul.f32 %v661, 3.0
      %v753 = vsub.f32 %v660, %v752
      %v754 = vmul.f32 %v657, %v753
      %v755 = vmul.f32 %v754, %v735
      %v756 = vadd.f32 %v751, %v755
      %v757 = vmul.f32 %v22, %v745
      %v758 = vmul.f32 %v25, %v756
      %v759 = vand.u32 2147483647, %v757
      %v760 = vand.u32 2147483647, %v758
      %v761 = vmax.f32 %v759, %v760
      %v762 = vsel %vm157, %v761, -inf
      %763 = vmax.xlane.f32.xlu0 %v762
      %v764 = vpop.xlane.xlu0 %763
      %vm765 = vcmp.lt.f32.partialorder %v764, 1e-06
      %v766 = vsel %vm765, 1, 0
      %v767 = vcvt.s32.f32 %v766
      %vm768 = vcmp.gt.f32.partialorder %v650, 0.5
      %v769 = vsel %vm768, %v648, %v657
      %v770 = vsel %vm768, %v649, %v659
      %v771 = vmax.f32 %v650, %v767
      %s772 = sadd.s32 %s41, 5
      %p773 = scmp.lt.s32.totalorder %s772, 1000
      %s774 = scalar_select %p773, 1, 0
      %s775 = scvt.s32.f32 %s774
      %v776 = vstv %s775
      %v777 = vmul.f32 %v776, %v757
      %v778 = vsub.f32 %v657, %v777
      %v779 = vmul.f32 %v776, %v758
      %v780 = vsub.f32 %v659, %v779
      %v781 = vmul.f32 %v778, %v778
      %v782 = vmul.f32 %v780, %v780
      %v783 = vmul.f32 %v778, %v780
      %v784 = vadd.f32 %v781, %v782
      %v785 = vmul.f32 %v781, %v782
      %v786 = vsub.f32 %v781, %v782
      %v787 = vmul.f32 %v783, %v786
      %v788 = vlaneseq
      %v789 = vshrl.u32 %v788, 7
      %v790 = vsub.s32 0, %v789
      %v791 = vrot.slane %v784, %v790
      %v792 = vmul.f32 %v791, %v30
      %v793 = vlaneseq
      %v794 = vshrl.u32 %v793, 7
      %v795 = vsub.s32 0, %v794
      %v796 = vrot.slane %v785, %v795
      %v797 = vmul.f32 %v796, %v34
      %v798 = vadd.f32 %v792, %v797
      %v799 = vlaneseq
      %v800 = vshrl.u32 %v799, 7
      %v801 = vsub.s32 0, %v800
      %v802 = vrot.slane %v787, %v801
      %v803 = vmul.f32 %v802, %v38
      %v804 = vadd.f32 %v798, %v803
      %v805 = vsel %vm78, %v804, -inf
      %v806 = vrot.slane %v805, 4
      %v807 = vmax.f32 %v805, %v806
      %v808 = vrot.slane %v807, 2
      %v809 = vmax.f32 %v807, %v808
      %v810 = vrot.slane %v809, 1
      %v811 = vmax.f32 %v809, %v810
      %v812 = vsub.f32 %v804, %v811
      %v813 = vmul.f32 %v812, 1.442695
      %v814 = vpow.pop %v813
      %v815 = vsel %vm78, %v814, 0.0
      %v816 = vrot.slane %v815, 4
      %v817 = vadd.f32 %v815, %v816
      %v818 = vrot.slane %v817, 2
      %v819 = vadd.f32 %v817, %v818
      %v820 = vrot.slane %v819, 1
      %v821 = vadd.f32 %v819, %v820
      %v822 = vmul.f32 %v814, %v30
      %v823 = vsel %vm78, %v822, 0.0
      %v824 = vrot.slane %v823, 4
      %v825 = vadd.f32 %v823, %v824
      %v826 = vrot.slane %v825, 2
      %v827 = vadd.f32 %v825, %v826
      %v828 = vrot.slane %v827, 1
      %v829 = vadd.f32 %v827, %v828
      %v830 = vmul.f32 %v814, %v34
      %v831 = vsel %vm78, %v830, 0.0
      %v832 = vrot.slane %v831, 4
      %v833 = vadd.f32 %v831, %v832
      %v834 = vrot.slane %v833, 2
      %v835 = vadd.f32 %v833, %v834
      %v836 = vrot.slane %v835, 1
      %v837 = vadd.f32 %v835, %v836
      %v838 = vmul.f32 %v814, %v38
      %v839 = vsel %vm78, %v838, 0.0
      %v840 = vrot.slane %v839, 4
      %v841 = vadd.f32 %v839, %v840
      %v842 = vrot.slane %v841, 2
      %v843 = vadd.f32 %v841, %v842
      %v844 = vrot.slane %v843, 1
      %v845 = vadd.f32 %v843, %v844
      %v846 = vrcp.pop %v821
      %v847 = vmul.f32 %v821, %v846
      %v848 = vsub.f32 2.0, %v847
      %v849 = vmul.f32 %v846, %v848
      %v850 = vmul.f32 %v849, 100.0
      %v851 = vmul.f32 %v829, %v850
      %v852 = vsub.f32 %v784, %v851
      %v853 = vmul.f32 %v837, %v850
      %v854 = vsub.f32 %v785, %v853
      %v855 = vmul.f32 %v845, %v850
      %v856 = vsub.f32 %v787, %v855
      %v857 = vmul.f32 %v778, 2.0
      %v858 = vmul.f32 %v857, %v852
      %v859 = vmul.f32 %v857, %v782
      %v860 = vmul.f32 %v859, %v854
      %v861 = vadd.f32 %v858, %v860
      %v862 = vmul.f32 %v781, 3.0
      %v863 = vsub.f32 %v862, %v782
      %v864 = vmul.f32 %v780, %v863
      %v865 = vmul.f32 %v864, %v856
      %v866 = vadd.f32 %v861, %v865
      %v867 = vmul.f32 %v780, 2.0
      %v868 = vmul.f32 %v867, %v852
      %v869 = vmul.f32 %v781, 2.0
      %v870 = vmul.f32 %v869, %v780
      %v871 = vmul.f32 %v870, %v854
      %v872 = vadd.f32 %v868, %v871
      %v873 = vmul.f32 %v782, 3.0
      %v874 = vsub.f32 %v781, %v873
      %v875 = vmul.f32 %v778, %v874
      %v876 = vmul.f32 %v875, %v856
      %v877 = vadd.f32 %v872, %v876
      %v878 = vmul.f32 %v22, %v866
      %v879 = vmul.f32 %v25, %v877
      %v880 = vand.u32 2147483647, %v878
      %v881 = vand.u32 2147483647, %v879
      %v882 = vmax.f32 %v880, %v881
      %v883 = vsel %vm157, %v882, -inf
      %884 = vmax.xlane.f32.xlu0 %v883
      %v885 = vpop.xlane.xlu0 %884
      %vm886 = vcmp.lt.f32.partialorder %v885, 1e-06
      %v887 = vsel %vm886, 1, 0
      %v888 = vcvt.s32.f32 %v887
      %vm889 = vcmp.gt.f32.partialorder %v771, 0.5
      %v890 = vsel %vm889, %v769, %v778
      %v891 = vsel %vm889, %v770, %v780
      %v892 = vmax.f32 %v771, %v888
      %s893 = sadd.s32 %s41, 6
      %p894 = scmp.lt.s32.totalorder %s893, 1000
      %s895 = scalar_select %p894, 1, 0
      %s896 = scvt.s32.f32 %s895
      %v897 = vstv %s896
      %v898 = vmul.f32 %v897, %v878
      %v899 = vsub.f32 %v778, %v898
      %v900 = vmul.f32 %v897, %v879
      %v901 = vsub.f32 %v780, %v900
      %v902 = vmul.f32 %v899, %v899
      %v903 = vmul.f32 %v901, %v901
      %v904 = vmul.f32 %v899, %v901
      %v905 = vadd.f32 %v902, %v903
      %v906 = vmul.f32 %v902, %v903
      %v907 = vsub.f32 %v902, %v903
      %v908 = vmul.f32 %v904, %v907
      %v909 = vlaneseq
      %v910 = vshrl.u32 %v909, 7
      %v911 = vsub.s32 0, %v910
      %v912 = vrot.slane %v905, %v911
      %v913 = vmul.f32 %v912, %v30
      %v914 = vlaneseq
      %v915 = vshrl.u32 %v914, 7
      %v916 = vsub.s32 0, %v915
      %v917 = vrot.slane %v906, %v916
      %v918 = vmul.f32 %v917, %v34
      %v919 = vadd.f32 %v913, %v918
      %v920 = vlaneseq
      %v921 = vshrl.u32 %v920, 7
      %v922 = vsub.s32 0, %v921
      %v923 = vrot.slane %v908, %v922
      %v924 = vmul.f32 %v923, %v38
      %v925 = vadd.f32 %v919, %v924
      %v926 = vsel %vm78, %v925, -inf
      %v927 = vrot.slane %v926, 4
      %v928 = vmax.f32 %v926, %v927
      %v929 = vrot.slane %v928, 2
      %v930 = vmax.f32 %v928, %v929
      %v931 = vrot.slane %v930, 1
      %v932 = vmax.f32 %v930, %v931
      %v933 = vsub.f32 %v925, %v932
      %v934 = vmul.f32 %v933, 1.442695
      %v935 = vpow.pop %v934
      %v936 = vsel %vm78, %v935, 0.0
      %v937 = vrot.slane %v936, 4
      %v938 = vadd.f32 %v936, %v937
      %v939 = vrot.slane %v938, 2
      %v940 = vadd.f32 %v938, %v939
      %v941 = vrot.slane %v940, 1
      %v942 = vadd.f32 %v940, %v941
      %v943 = vmul.f32 %v935, %v30
      %v944 = vsel %vm78, %v943, 0.0
      %v945 = vrot.slane %v944, 4
      %v946 = vadd.f32 %v944, %v945
      %v947 = vrot.slane %v946, 2
      %v948 = vadd.f32 %v946, %v947
      %v949 = vrot.slane %v948, 1
      %v950 = vadd.f32 %v948, %v949
      %v951 = vmul.f32 %v935, %v34
      %v952 = vsel %vm78, %v951, 0.0
      %v953 = vrot.slane %v952, 4
      %v954 = vadd.f32 %v952, %v953
      %v955 = vrot.slane %v954, 2
      %v956 = vadd.f32 %v954, %v955
      %v957 = vrot.slane %v956, 1
      %v958 = vadd.f32 %v956, %v957
      %v959 = vmul.f32 %v935, %v38
      %v960 = vsel %vm78, %v959, 0.0
      %v961 = vrot.slane %v960, 4
      %v962 = vadd.f32 %v960, %v961
      %v963 = vrot.slane %v962, 2
      %v964 = vadd.f32 %v962, %v963
      %v965 = vrot.slane %v964, 1
      %v966 = vadd.f32 %v964, %v965
      %v967 = vrcp.pop %v942
      %v968 = vmul.f32 %v942, %v967
      %v969 = vsub.f32 2.0, %v968
      %v970 = vmul.f32 %v967, %v969
      %v971 = vmul.f32 %v970, 100.0
      %v972 = vmul.f32 %v950, %v971
      %v973 = vsub.f32 %v905, %v972
      %v974 = vmul.f32 %v958, %v971
      %v975 = vsub.f32 %v906, %v974
      %v976 = vmul.f32 %v966, %v971
      %v977 = vsub.f32 %v908, %v976
      %v978 = vmul.f32 %v899, 2.0
      %v979 = vmul.f32 %v978, %v973
      %v980 = vmul.f32 %v978, %v903
      %v981 = vmul.f32 %v980, %v975
      %v982 = vadd.f32 %v979, %v981
      %v983 = vmul.f32 %v902, 3.0
      %v984 = vsub.f32 %v983, %v903
      %v985 = vmul.f32 %v901, %v984
      %v986 = vmul.f32 %v985, %v977
      %v987 = vadd.f32 %v982, %v986
      %v988 = vmul.f32 %v901, 2.0
      %v989 = vmul.f32 %v988, %v973
      %v990 = vmul.f32 %v902, 2.0
      %v991 = vmul.f32 %v990, %v901
      %v992 = vmul.f32 %v991, %v975
      %v993 = vadd.f32 %v989, %v992
      %v994 = vmul.f32 %v903, 3.0
      %v995 = vsub.f32 %v902, %v994
      %v996 = vmul.f32 %v899, %v995
      %v997 = vmul.f32 %v996, %v977
      %v998 = vadd.f32 %v993, %v997
      %v999 = vmul.f32 %v22, %v987
      %v1000 = vmul.f32 %v25, %v998
      %v1001 = vand.u32 2147483647, %v999
      %v1002 = vand.u32 2147483647, %v1000
      %v1003 = vmax.f32 %v1001, %v1002
      %v1004 = vsel %vm157, %v1003, -inf
      %1005 = vmax.xlane.f32.xlu0 %v1004
      %v1006 = vpop.xlane.xlu0 %1005
      %vm1007 = vcmp.lt.f32.partialorder %v1006, 1e-06
      %v1008 = vsel %vm1007, 1, 0
      %v1009 = vcvt.s32.f32 %v1008
      %vm1010 = vcmp.gt.f32.partialorder %v892, 0.5
      %v1011 = vsel %vm1010, %v890, %v899
      %v1012 = vsel %vm1010, %v891, %v901
      %v1013 = vmax.f32 %v892, %v1009
      %s1014 = sadd.s32 %s41, 7
      %p1015 = scmp.lt.s32.totalorder %s1014, 1000
      %s1016 = scalar_select %p1015, 1, 0
      %s1017 = scvt.s32.f32 %s1016
      %v1018 = vstv %s1017
      %v1019 = vmul.f32 %v1018, %v999
      %v1020 = vsub.f32 %v899, %v1019
      %v1021 = vmul.f32 %v1018, %v1000
      %v1022 = vsub.f32 %v901, %v1021
      %s1023 = sadd.s32 %s41, 8
    $region22: #{tpu_custom_call.1} parent=1 // loop_footer
      _
    $region23: #{tpu_custom_call.1} parent=1 // loop_footer_branch
      %40 = sbr.rel target = $region19
    $region24: #{tpu_custom_call.1} parent=1 // loop_exit
      _
    %vm1024 = vcmp.gt.f32.partialorder %v46, 0.5
    %v1025 = vsel %vm1024, %v44, %v42
    %vm1026 = vcmask 57344
    %1027 = vst.msk [vmem:[#allocation2] sm:$0x1] %vm1026, %v1025
    %v1028 = vsel %vm1024, %v45, %v43
    %1029 = vst.msk [vmem:[#allocation2 + $0x1] sm:$0x1] %vm1026, %v1028
    // Predicated region
    $region25: #{tpu_custom_call.1} parent=1 // pred_check
      _
    $region26: #{tpu_custom_call.1} parent=1 // pred_check_branch
      %1031 = sbr.rel (0) target = $region28
    $region27: #{tpu_custom_call.1} parent=1 // pred_region
      %s1033 = ssub.s32 32, 32
      %1034 = vsyncadd [#allocation3], %s1033
      %s1036 = sshll.u32 [#allocation2], 4
      %s1037 = int_to_ptr.vmem [resolvable:$true] %s1036
      %1039 = dma.vmem_to_hbm [thread:$0]  %s1037, 32, %s4, [#allocation3]
    $region28: #{tpu_custom_call.1} parent=1 // pred_fallthru
      _
    // Predicated region
    $region29: #{tpu_custom_call.1} parent=1 // pred_check
      _
    $region30: #{tpu_custom_call.1} parent=1 // pred_check_branch
      %1041 = sbr.rel (0) target = $region32
    $region31: #{tpu_custom_call.1} parent=1 // pred_region
      %1042 = dma.done [#allocation3], 32
    $region32: #{tpu_custom_call.1} parent=1 // pred_fallthru
      _
    %1043 = vsyncpa [#allocation3], 1

</llo_original>
